<compile_context>
chip_gen: v7x
topology: tpu7x:2x2x1
jax: 0.10.0
libtpu: 0.0.40
codegen_flags: <defaults>
</compile_context>

<pallas_src>
import functools

import jax
import jax.numpy as jnp
from jax import lax
from jax.experimental import pallas as pl
from jax.experimental.pallas import tpu as pltpu


# ----------------------------------------------------------------------------
# Fused kernel: im2col conv1d (same padding, no bias, W_ih folded in)
#               -> reverse-direction LSTM final hidden
#               -> residual MLP head -> sigmoid(class-1 probability).
# Gate column order inside the kernel (host-permuted): i, f, o, g.
# ----------------------------------------------------------------------------
def tsmixed_fused_kernel(x_ref, wxm_ref, whh_ref, bg_ref,
                         w1_ref, b1_ref, w2_ref, b2_ref, wd_ref, bd_ref,
                         probs_ref, *, B, T, K):
    TB, Cin = x_ref.shape              # time-major rows: row = t*B + b
    KC, H4 = wxm_ref.shape
    H = whh_ref.shape[0]
    pad = (K - 1) // 2
    H3 = 3 * H

    # ---- Stage 1: conv1d + LSTM input projection as ONE im2col matmul ------
    xflat = x_ref[...]                                         # (T*B, Cin)
    zhalo = jnp.zeros((pad * B, Cin), jnp.float32)             # halo rows only
    xpadded = jnp.concatenate([zhalo, xflat, zhalo], axis=0)   # ((T+2p)*B, Cin)
    imcol = jnp.concatenate(
        [xpadded[k * B:k * B + T * B, :] for k in range(K)],
        axis=-1)                                               # (T*B, K*Cin)
    xg_all = jnp.dot(imcol, wxm_ref[...],
                     preferred_element_type=jnp.float32) + bg_ref[...]
    # Register-resident x-gates, time-major contiguous slices (B, 4H) each.
    xg = [xg_all[t * B:(t + 1) * B, :] for t in range(T)]

    # ---- Stage 2: reverse-direction LSTM (h_n[-1]), t = T-1 ... 0 ----------
    whh = whh_ref[...]                                         # (H, 4H), hoisted
    h = jnp.zeros((B, H), jnp.float32)
    c = jnp.zeros((B, H), jnp.float32)
    for step in range(T):                                      # static unroll
        t = T - 1 - step
        gates = xg[t] + jnp.dot(h, whh, preferred_element_type=jnp.float32)
        sg = jax.nn.sigmoid(gates[:, :H3])                     # i, f, o lanes
        g_g = jnp.tanh(gates[:, H3:])                          # g lanes
        i_g = sg[:, :H]
        f_g = sg[:, H:2 * H]
        o_g = sg[:, 2 * H:H3]
        c = f_g * c + i_g * g_g
        h = o_g * jnp.tanh(c)

    # ---- Stage 3: head; softmax[:,1] folded into a sigmoid -----------------
    z = jnp.maximum(
        jnp.dot(h, w1_ref[...], preferred_element_type=jnp.float32)
        + b1_ref[...], 0.0)                                    # relu; dropout=id
    proj = (jnp.dot(z, w2_ref[...], preferred_element_type=jnp.float32)
            + b2_ref[...] + h)                                 # residual add
    logit = jnp.sum(proj * wd_ref[...], axis=-1, keepdims=True) + bd_ref[...]
    probs_ref[...] = jax.nn.sigmoid(logit).astype(probs_ref.dtype)


def tsmixed_fused(x_tm, B, T, K, wxm, whh_t, bg, w1_t, b1, w2_t, b2, wd, bd):
    """x_tm: time-major flattened input (T*B, Cin). Returns P(class=1), (B,1)."""
    TB, Cin = x_tm.shape
    KC, H4 = wxm.shape
    H = whh_t.shape[0]
    kernel = functools.partial(tsmixed_fused_kernel, B=B, T=T, K=K)
    return pl.pallas_call(
        kernel,
        out_shape=jax.ShapeDtypeStruct((B, 1), jnp.float32),
        grid_spec=pltpu.PrefetchScalarGridSpec(
            num_scalar_prefetch=0,
            grid=(1,),
            in_specs=[
                pl.BlockSpec((TB, Cin), lambda i: (0, 0)),
                pl.BlockSpec((KC, H4), lambda i: (0, 0)),
                pl.BlockSpec((H, H4), lambda i: (0, 0)),
                pl.BlockSpec((1, H4), lambda i: (0, 0)),
                pl.BlockSpec((H, H), lambda i: (0, 0)),
                pl.BlockSpec((1, H), lambda i: (0, 0)),
                pl.BlockSpec((H, H), lambda i: (0, 0)),
                pl.BlockSpec((1, H), lambda i: (0, 0)),
                pl.BlockSpec((1, H), lambda i: (0, 0)),
                pl.BlockSpec((1, 1), lambda i: (0, 0)),
            ],
            out_specs=pl.BlockSpec((B, 1), lambda i: (0, 0)),
        ),
        compiler_params=pltpu.CompilerParams(
            dimension_semantics=("arbitrary",)),
    )(x_tm, wxm, whh_t, bg, w1_t, b1, w2_t, b2, wd, bd)


# ----------------------------------------------------------------------------
# Parameter init (deterministic, PyTorch shapes) + conversion to kernel layout:
#   * W_ih folded into the conv weights, reshaped to (K*Cin, 4H),
#   * gate columns permuted [i,f,g,o] -> [i,f,o,g],
#   * 2-class head collapsed to a single logit-difference vector.
# ----------------------------------------------------------------------------
def init_params(key, orig_reg_d_ts, d_ts, kernel_size, num_labels):
    ks = jax.random.split(key, 11)
    s = 0.1
    H = d_ts
    pt = dict(
        conv_w=s * jax.random.normal(ks[0], (d_ts, orig_reg_d_ts, kernel_size)),
        w_ih=s * jax.random.normal(ks[1], (4 * H, d_ts)),      # reverse dir
        w_hh=s * jax.random.normal(ks[2], (4 * H, H)),
        b_ih=s * jax.random.normal(ks[3], (4 * H,)),
        b_hh=s * jax.random.normal(ks[4], (4 * H,)),
        w1=s * jax.random.normal(ks[5], (d_ts, d_ts)),
        b1=s * jax.random.normal(ks[6], (d_ts,)),
        w2=s * jax.random.normal(ks[7], (d_ts, d_ts)),
        b2=s * jax.random.normal(ks[8], (d_ts,)),
        wo=s * jax.random.normal(ks[9], (num_labels, d_ts)),
        bo=s * jax.random.normal(ks[10], (num_labels,)),
    )
    pt = {k: v.astype(jnp.float32) for k, v in pt.items()}

    K, Cin = kernel_size, orig_reg_d_ts

    def perm_gates(m):
        # columns [i, f, g, o] -> [i, f, o, g] (sigmoid block first, tanh last)
        return jnp.concatenate(
            [m[..., :2 * H], m[..., 3 * H:4 * H], m[..., 2 * H:3 * H]], axis=-1)

    # Fold W_ih into the conv: wx[k, c, :] = conv_w[:, c, k]^T @ W_ih^T.
    conv_kio = jnp.transpose(pt["conv_w"], (2, 1, 0))           # (K, Cin, d_ts)
    wx = jnp.einsum("kcd,gd->kcg", conv_kio, pt["w_ih"],
                    precision=lax.Precision.HIGHEST)            # (K, Cin, 4H)
    kp = dict(
        wxm=perm_gates(wx).reshape(K * Cin, 4 * H),             # (K*Cin, 4H)
        whh_t=perm_gates(pt["w_hh"].T),                         # (H, 4H)
        bg=perm_gates((pt["b_ih"] + pt["b_hh"]).reshape(1, 4 * H)),
        w1_t=pt["w1"].T, b1=pt["b1"].reshape(1, -1),
        w2_t=pt["w2"].T, b2=pt["b2"].reshape(1, -1),
        wd=(pt["wo"][1] - pt["wo"][0]).reshape(1, -1),          # softmax fold
        bd=(pt["bo"][1] - pt["bo"][0]).reshape(1, 1),
    )
    return pt, kp


# ----------------------------------------------------------------------------
# TSMixed.forward (config above), labels=None -> softmax(output)[:, 1]
# ----------------------------------------------------------------------------
def ts_mixed_forward(kparams, kernel_size, x_ts, x_ts_mask, ts_tt_list,
                     labels=None, reg_ts=None):
    # x_ts / x_ts_mask / ts_tt_list are accepted but unused under this config
    # (Interp=False, irregular_learn_emb_ts=False), exactly as in PyTorch.
    del x_ts, x_ts_mask, ts_tt_list, labels
    B, T, Cin = reg_ts.shape
    K = kparams["wxm"].shape[0] // Cin
    assert K == kernel_size
    # Layout plumbing only: present time-major rows (row = t*B + b) so the
    # kernel's im2col slab and per-step x-gate slices are contiguous.
    x_tm = jnp.transpose(reg_ts, (1, 0, 2)).reshape(T * B, Cin)
    probs = tsmixed_fused(x_tm, B, T, K, kparams["wxm"], kparams["whh_t"],
                          kparams["bg"], kparams["w1_t"], kparams["b1"],
                          kparams["w2_t"], kparams["b2"],
                          kparams["wd"], kparams["bd"])
    return probs[:, 0]                                          # task='ihm'


# ----------------------------------------------------------------------------
# Pure-JAX reference (mirrors the PyTorch ops) for a numerical sanity check.
# ----------------------------------------------------------------------------
def ts_mixed_reference(pt, kernel_size, reg_ts):
    prec = lax.Precision.HIGHEST
    B, T, _ = reg_ts.shape
    K = kernel_size
    pad = (K - 1) // 2
    conv_w = pt["conv_w"]                                       # (Cout, Cin, K)
    Cout = conv_w.shape[0]
    xpad = jnp.pad(reg_ts, ((0, 0), (pad, pad), (0, 0)))
    conv = jnp.zeros((B, T, Cout), jnp.float32)
    for k in range(K):
        conv = conv + jnp.einsum("btc,oc->bto", xpad[:, k:k + T, :],
                                 conv_w[:, :, k], precision=prec)
    proj = jnp.transpose(conv, (1, 0, 2))                       # (T, B, Cout)
    H = pt["w_hh"].shape[1]
    h = jnp.zeros((B, H), jnp.float32)
    c = jnp.zeros((B, H), jnp.float32)
    for t in range(T - 1, -1, -1):                              # reverse dir
        g = (jnp.dot(proj[t], pt["w_ih"].T, precision=prec) + pt["b_ih"]
             + jnp.dot(h, pt["w_hh"].T, precision=prec) + pt["b_hh"])
        i_g = jax.nn.sigmoid(g[:, 0 * H:1 * H])
        f_g = jax.nn.sigmoid(g[:, 1 * H:2 * H])
        g_g = jnp.tanh(g[:, 2 * H:3 * H])
        o_g = jax.nn.sigmoid(g[:, 3 * H:4 * H])
        c = f_g * c + i_g * g_g
        h = o_g * jnp.tanh(c)
    z = jnp.maximum(jnp.dot(h, pt["w1"].T, precision=prec) + pt["b1"], 0.0)
    hs = jnp.dot(z, pt["w2"].T, precision=prec) + pt["b2"] + h
    logits = jnp.dot(hs, pt["wo"].T, precision=prec) + pt["bo"]
    return jax.nn.softmax(logits, axis=-1)[:, 1]


if __name__ == "__main__":
    key = jax.random.PRNGKey(0)
    B, T_reg = 2, 8
    orig_reg_d_ts = 16
    d_ts = 32
    kernel_size = 3
    num_labels = 2
    T_irr, orig_d_ts = 6, 12

    k0, k1, k2, k3, kparam = jax.random.split(key, 5)
    x_ts = jax.random.normal(k0, (B, T_irr, orig_d_ts), jnp.float32)
    x_ts_mask = (jax.random.uniform(k1, (B, T_irr, orig_d_ts)) > 0.5
                 ).astype(jnp.float32)
    ts_tt_list = jnp.sort(jax.random.uniform(k2, (B, T_irr)), axis=-1)
    reg_ts = jax.random.normal(k3, (B, T_reg, orig_reg_d_ts), jnp.float32)

    pt_params, kparams = init_params(kparam, orig_reg_d_ts, d_ts,
                                     kernel_size, num_labels)

    out = ts_mixed_forward(kparams, kernel_size, x_ts, x_ts_mask, ts_tt_list,
                           labels=None, reg_ts=reg_ts)
    jax.block_until_ready(out)
    assert out.shape == (B,)

    ref = ts_mixed_reference(pt_params, kernel_size, reg_ts)
    assert bool(jnp.allclose(out, ref, atol=5e-3, rtol=5e-3)), (out, ref)
    print("KERNEL_OK")
</pallas_src>

<mosaic_0001>
module attributes {stable_mosaic.version = 11 : i64} {
  func.func @tsmixed_fused_kernel(%arg0: i32, %arg1: memref<16x16xf32, #tpu.memory_space<vmem>>, %arg2: memref<48x128xf32, #tpu.memory_space<vmem>>, %arg3: memref<32x128xf32, #tpu.memory_space<vmem>>, %arg4: memref<1x128xf32, #tpu.memory_space<vmem>>, %arg5: memref<32x32xf32, #tpu.memory_space<vmem>>, %arg6: memref<1x32xf32, #tpu.memory_space<vmem>>, %arg7: memref<32x32xf32, #tpu.memory_space<vmem>>, %arg8: memref<1x32xf32, #tpu.memory_space<vmem>>, %arg9: memref<1x32xf32, #tpu.memory_space<vmem>>, %arg10: memref<1x1xf32, #tpu.memory_space<vmem>>, %arg11: memref<2x1xf32, #tpu.memory_space<vmem>>) attributes {dimension_semantics = [#tpu.dimension_semantics<arbitrary>], iteration_bounds = array<i64: 1>, scalar_prefetch = 0 : i64, scratch_operands = 0 : i64, tpu.core_type = #tpu.core_type<tc>, window_params = [{pipeline_mode = #tpu.pipeline_mode<synchronous>, transform_indices = @transform_0, window_bounds = array<i64: 16, 16>}, {pipeline_mode = #tpu.pipeline_mode<synchronous>, transform_indices = @transform_1, window_bounds = array<i64: 48, 128>}, {pipeline_mode = #tpu.pipeline_mode<synchronous>, transform_indices = @transform_2, window_bounds = array<i64: 32, 128>}, {pipeline_mode = #tpu.pipeline_mode<synchronous>, transform_indices = @transform_3, window_bounds = array<i64: 1, 128>}, {pipeline_mode = #tpu.pipeline_mode<synchronous>, transform_indices = @transform_4, window_bounds = array<i64: 32, 32>}, {pipeline_mode = #tpu.pipeline_mode<synchronous>, transform_indices = @transform_5, window_bounds = array<i64: 1, 32>}, {pipeline_mode = #tpu.pipeline_mode<synchronous>, transform_indices = @transform_6, window_bounds = array<i64: 32, 32>}, {pipeline_mode = #tpu.pipeline_mode<synchronous>, transform_indices = @transform_7, window_bounds = array<i64: 1, 32>}, {pipeline_mode = #tpu.pipeline_mode<synchronous>, transform_indices = @transform_8, window_bounds = array<i64: 1, 32>}, {pipeline_mode = #tpu.pipeline_mode<synchronous>, transform_indices = @transform_9, window_bounds = array<i64: 1, 1>}, {pipeline_mode = #tpu.pipeline_mode<synchronous>, transform_indices = @transform_10, window_bounds = array<i64: 2, 1>}]} {
    %c0 = arith.constant 0 : index
    %c0_0 = arith.constant 0 : index
    %0 = vector.load %arg1[%c0, %c0_0] : memref<16x16xf32, #tpu.memory_space<vmem>>, vector<16x16xf32>
    %cst = arith.constant 0.000000e+00 : f32
    %1 = vector.broadcast %cst : f32 to vector<2x16xf32>
    %2 = tpu.concatenate %1, %0, %1 in 0 : vector<2x16xf32>, vector<16x16xf32>, vector<2x16xf32> -> vector<20x16xf32>
    %3 = vector.extract_strided_slice %2 {offsets = [0, 0], sizes = [16, 16], strides = [1, 1]} : vector<20x16xf32> to vector<16x16xf32>
    %4 = vector.extract_strided_slice %2 {offsets = [2, 0], sizes = [16, 16], strides = [1, 1]} : vector<20x16xf32> to vector<16x16xf32>
    %5 = vector.extract_strided_slice %2 {offsets = [4, 0], sizes = [16, 16], strides = [1, 1]} : vector<20x16xf32> to vector<16x16xf32>
    %6 = tpu.concatenate %3, %4, %5 in 1 : vector<16x16xf32>, vector<16x16xf32>, vector<16x16xf32> -> vector<16x48xf32>
    %c0_1 = arith.constant 0 : index
    %c0_2 = arith.constant 0 : index
    %7 = vector.load %arg2[%c0_1, %c0_2] : memref<48x128xf32, #tpu.memory_space<vmem>>, vector<48x128xf32>
    %cst_3 = arith.constant dense<0.000000e+00> : vector<16x128xf32>
    %8 = tpu.matmul %6, %7, %cst_3 {dimension_numbers = #tpu.dot_dimension_numbers<[1], [0], [0], [1], [0, 0, 1, 1], [], []>} : vector<16x48xf32>, vector<48x128xf32>, vector<16x128xf32> -> vector<16x128xf32>
    %c0_4 = arith.constant 0 : index
    %c0_5 = arith.constant 0 : index
    %9 = vector.load %arg4[%c0_4, %c0_5] : memref<1x128xf32, #tpu.memory_space<vmem>>, vector<1x128xf32>
    %10 = vector.broadcast %9 : vector<1x128xf32> to vector<16x128xf32>
    %11 = arith.addf %8, %10 : vector<16x128xf32>
    %12 = vector.extract_strided_slice %11 {offsets = [0, 0], sizes = [2, 128], strides = [1, 1]} : vector<16x128xf32> to vector<2x128xf32>
    %13 = vector.extract_strided_slice %11 {offsets = [2, 0], sizes = [2, 128], strides = [1, 1]} : vector<16x128xf32> to vector<2x128xf32>
    %14 = vector.extract_strided_slice %11 {offsets = [4, 0], sizes = [2, 128], strides = [1, 1]} : vector<16x128xf32> to vector<2x128xf32>
    %15 = vector.extract_strided_slice %11 {offsets = [6, 0], sizes = [2, 128], strides = [1, 1]} : vector<16x128xf32> to vector<2x128xf32>
    %16 = vector.extract_strided_slice %11 {offsets = [8, 0], sizes = [2, 128], strides = [1, 1]} : vector<16x128xf32> to vector<2x128xf32>
    %17 = vector.extract_strided_slice %11 {offsets = [10, 0], sizes = [2, 128], strides = [1, 1]} : vector<16x128xf32> to vector<2x128xf32>
    %18 = vector.extract_strided_slice %11 {offsets = [12, 0], sizes = [2, 128], strides = [1, 1]} : vector<16x128xf32> to vector<2x128xf32>
    %19 = vector.extract_strided_slice %11 {offsets = [14, 0], sizes = [2, 128], strides = [1, 1]} : vector<16x128xf32> to vector<2x128xf32>
    %c0_6 = arith.constant 0 : index
    %c0_7 = arith.constant 0 : index
    %20 = vector.load %arg3[%c0_6, %c0_7] : memref<32x128xf32, #tpu.memory_space<vmem>>, vector<32x128xf32>
    %cst_8 = arith.constant 0.000000e+00 : f32
    %21 = vector.broadcast %cst_8 : f32 to vector<2x32xf32>
    %cst_9 = arith.constant 0.000000e+00 : f32
    %22 = vector.broadcast %cst_9 : f32 to vector<2x32xf32>
    %cst_10 = arith.constant dense<0.000000e+00> : vector<2x128xf32>
    %23 = tpu.matmul %21, %20, %cst_10 {dimension_numbers = #tpu.dot_dimension_numbers<[1], [0], [0], [1], [0, 0, 1, 1], [], []>} : vector<2x32xf32>, vector<32x128xf32>, vector<2x128xf32> -> vector<2x128xf32>
    %24 = arith.addf %19, %23 : vector<2x128xf32>
    %25 = vector.extract_strided_slice %24 {offsets = [0, 0], sizes = [2, 96], strides = [1, 1]} : vector<2x128xf32> to vector<2x96xf32>
    %26 = arith.negf %25 : vector<2x96xf32>
    %27 = math.exp %26 : vector<2x96xf32>
    %cst_11 = arith.constant 1.000000e+00 : f32
    %28 = vector.broadcast %cst_11 : f32 to vector<2x96xf32>
    %29 = arith.addf %28, %27 : vector<2x96xf32>
    %30 = arith.divf %28, %29 : vector<2x96xf32>
    %31 = vector.extract_strided_slice %24 {offsets = [0, 96], sizes = [2, 32], strides = [1, 1]} : vector<2x128xf32> to vector<2x32xf32>
    %32 = math.tanh %31 : vector<2x32xf32>
    %33 = vector.extract_strided_slice %30 {offsets = [0, 0], sizes = [2, 32], strides = [1, 1]} : vector<2x96xf32> to vector<2x32xf32>
    %34 = vector.extract_strided_slice %30 {offsets = [0, 32], sizes = [2, 32], strides = [1, 1]} : vector<2x96xf32> to vector<2x32xf32>
    %35 = vector.extract_strided_slice %30 {offsets = [0, 64], sizes = [2, 32], strides = [1, 1]} : vector<2x96xf32> to vector<2x32xf32>
    %36 = arith.mulf %34, %22 : vector<2x32xf32>
    %37 = arith.mulf %33, %32 : vector<2x32xf32>
    %38 = arith.addf %36, %37 : vector<2x32xf32>
    %39 = math.tanh %38 : vector<2x32xf32>
    %40 = arith.mulf %35, %39 : vector<2x32xf32>
    %cst_12 = arith.constant dense<0.000000e+00> : vector<2x128xf32>
    %41 = tpu.matmul %40, %20, %cst_12 {dimension_numbers = #tpu.dot_dimension_numbers<[1], [0], [0], [1], [0, 0, 1, 1], [], []>} : vector<2x32xf32>, vector<32x128xf32>, vector<2x128xf32> -> vector<2x128xf32>
    %42 = arith.addf %18, %41 : vector<2x128xf32>
    %43 = vector.extract_strided_slice %42 {offsets = [0, 0], sizes = [2, 96], strides = [1, 1]} : vector<2x128xf32> to vector<2x96xf32>
    %44 = arith.negf %43 : vector<2x96xf32>
    %45 = math.exp %44 : vector<2x96xf32>
    %cst_13 = arith.constant 1.000000e+00 : f32
    %46 = vector.broadcast %cst_13 : f32 to vector<2x96xf32>
    %47 = arith.addf %46, %45 : vector<2x96xf32>
    %48 = arith.divf %46, %47 : vector<2x96xf32>
    %49 = vector.extract_strided_slice %42 {offsets = [0, 96], sizes = [2, 32], strides = [1, 1]} : vector<2x128xf32> to vector<2x32xf32>
    %50 = math.tanh %49 : vector<2x32xf32>
    %51 = vector.extract_strided_slice %48 {offsets = [0, 0], sizes = [2, 32], strides = [1, 1]} : vector<2x96xf32> to vector<2x32xf32>
    %52 = vector.extract_strided_slice %48 {offsets = [0, 32], sizes = [2, 32], strides = [1, 1]} : vector<2x96xf32> to vector<2x32xf32>
    %53 = vector.extract_strided_slice %48 {offsets = [0, 64], sizes = [2, 32], strides = [1, 1]} : vector<2x96xf32> to vector<2x32xf32>
    %54 = arith.mulf %52, %38 : vector<2x32xf32>
    %55 = arith.mulf %51, %50 : vector<2x32xf32>
    %56 = arith.addf %54, %55 : vector<2x32xf32>
    %57 = math.tanh %56 : vector<2x32xf32>
    %58 = arith.mulf %53, %57 : vector<2x32xf32>
    %cst_14 = arith.constant dense<0.000000e+00> : vector<2x128xf32>
    %59 = tpu.matmul %58, %20, %cst_14 {dimension_numbers = #tpu.dot_dimension_numbers<[1], [0], [0], [1], [0, 0, 1, 1], [], []>} : vector<2x32xf32>, vector<32x128xf32>, vector<2x128xf32> -> vector<2x128xf32>
    %60 = arith.addf %17, %59 : vector<2x128xf32>
    %61 = vector.extract_strided_slice %60 {offsets = [0, 0], sizes = [2, 96], strides = [1, 1]} : vector<2x128xf32> to vector<2x96xf32>
    %62 = arith.negf %61 : vector<2x96xf32>
    %63 = math.exp %62 : vector<2x96xf32>
    %cst_15 = arith.constant 1.000000e+00 : f32
    %64 = vector.broadcast %cst_15 : f32 to vector<2x96xf32>
    %65 = arith.addf %64, %63 : vector<2x96xf32>
    %66 = arith.divf %64, %65 : vector<2x96xf32>
    %67 = vector.extract_strided_slice %60 {offsets = [0, 96], sizes = [2, 32], strides = [1, 1]} : vector<2x128xf32> to vector<2x32xf32>
    %68 = math.tanh %67 : vector<2x32xf32>
    %69 = vector.extract_strided_slice %66 {offsets = [0, 0], sizes = [2, 32], strides = [1, 1]} : vector<2x96xf32> to vector<2x32xf32>
    %70 = vector.extract_strided_slice %66 {offsets = [0, 32], sizes = [2, 32], strides = [1, 1]} : vector<2x96xf32> to vector<2x32xf32>
    %71 = vector.extract_strided_slice %66 {offsets = [0, 64], sizes = [2, 32], strides = [1, 1]} : vector<2x96xf32> to vector<2x32xf32>
    %72 = arith.mulf %70, %56 : vector<2x32xf32>
    %73 = arith.mulf %69, %68 : vector<2x32xf32>
    %74 = arith.addf %72, %73 : vector<2x32xf32>
    %75 = math.tanh %74 : vector<2x32xf32>
    %76 = arith.mulf %71, %75 : vector<2x32xf32>
    %cst_16 = arith.constant dense<0.000000e+00> : vector<2x128xf32>
    %77 = tpu.matmul %76, %20, %cst_16 {dimension_numbers = #tpu.dot_dimension_numbers<[1], [0], [0], [1], [0, 0, 1, 1], [], []>} : vector<2x32xf32>, vector<32x128xf32>, vector<2x128xf32> -> vector<2x128xf32>
    %78 = arith.addf %16, %77 : vector<2x128xf32>
    %79 = vector.extract_strided_slice %78 {offsets = [0, 0], sizes = [2, 96], strides = [1, 1]} : vector<2x128xf32> to vector<2x96xf32>
    %80 = arith.negf %79 : vector<2x96xf32>
    %81 = math.exp %80 : vector<2x96xf32>
    %cst_17 = arith.constant 1.000000e+00 : f32
    %82 = vector.broadcast %cst_17 : f32 to vector<2x96xf32>
    %83 = arith.addf %82, %81 : vector<2x96xf32>
    %84 = arith.divf %82, %83 : vector<2x96xf32>
    %85 = vector.extract_strided_slice %78 {offsets = [0, 96], sizes = [2, 32], strides = [1, 1]} : vector<2x128xf32> to vector<2x32xf32>
    %86 = math.tanh %85 : vector<2x32xf32>
    %87 = vector.extract_strided_slice %84 {offsets = [0, 0], sizes = [2, 32], strides = [1, 1]} : vector<2x96xf32> to vector<2x32xf32>
    %88 = vector.extract_strided_slice %84 {offsets = [0, 32], sizes = [2, 32], strides = [1, 1]} : vector<2x96xf32> to vector<2x32xf32>
    %89 = vector.extract_strided_slice %84 {offsets = [0, 64], sizes = [2, 32], strides = [1, 1]} : vector<2x96xf32> to vector<2x32xf32>
    %90 = arith.mulf %88, %74 : vector<2x32xf32>
    %91 = arith.mulf %87, %86 : vector<2x32xf32>
    %92 = arith.addf %90, %91 : vector<2x32xf32>
    %93 = math.tanh %92 : vector<2x32xf32>
    %94 = arith.mulf %89, %93 : vector<2x32xf32>
    %cst_18 = arith.constant dense<0.000000e+00> : vector<2x128xf32>
    %95 = tpu.matmul %94, %20, %cst_18 {dimension_numbers = #tpu.dot_dimension_numbers<[1], [0], [0], [1], [0, 0, 1, 1], [], []>} : vector<2x32xf32>, vector<32x128xf32>, vector<2x128xf32> -> vector<2x128xf32>
    %96 = arith.addf %15, %95 : vector<2x128xf32>
    %97 = vector.extract_strided_slice %96 {offsets = [0, 0], sizes = [2, 96], strides = [1, 1]} : vector<2x128xf32> to vector<2x96xf32>
    %98 = arith.negf %97 : vector<2x96xf32>
    %99 = math.exp %98 : vector<2x96xf32>
    %cst_19 = arith.constant 1.000000e+00 : f32
    %100 = vector.broadcast %cst_19 : f32 to vector<2x96xf32>
    %101 = arith.addf %100, %99 : vector<2x96xf32>
    %102 = arith.divf %100, %101 : vector<2x96xf32>
    %103 = vector.extract_strided_slice %96 {offsets = [0, 96], sizes = [2, 32], strides = [1, 1]} : vector<2x128xf32> to vector<2x32xf32>
    %104 = math.tanh %103 : vector<2x32xf32>
    %105 = vector.extract_strided_slice %102 {offsets = [0, 0], sizes = [2, 32], strides = [1, 1]} : vector<2x96xf32> to vector<2x32xf32>
    %106 = vector.extract_strided_slice %102 {offsets = [0, 32], sizes = [2, 32], strides = [1, 1]} : vector<2x96xf32> to vector<2x32xf32>
    %107 = vector.extract_strided_slice %102 {offsets = [0, 64], sizes = [2, 32], strides = [1, 1]} : vector<2x96xf32> to vector<2x32xf32>
    %108 = arith.mulf %106, %92 : vector<2x32xf32>
    %109 = arith.mulf %105, %104 : vector<2x32xf32>
    %110 = arith.addf %108, %109 : vector<2x32xf32>
    %111 = math.tanh %110 : vector<2x32xf32>
    %112 = arith.mulf %107, %111 : vector<2x32xf32>
    %cst_20 = arith.constant dense<0.000000e+00> : vector<2x128xf32>
    %113 = tpu.matmul %112, %20, %cst_20 {dimension_numbers = #tpu.dot_dimension_numbers<[1], [0], [0], [1], [0, 0, 1, 1], [], []>} : vector<2x32xf32>, vector<32x128xf32>, vector<2x128xf32> -> vector<2x128xf32>
    %114 = arith.addf %14, %113 : vector<2x128xf32>
    %115 = vector.extract_strided_slice %114 {offsets = [0, 0], sizes = [2, 96], strides = [1, 1]} : vector<2x128xf32> to vector<2x96xf32>
    %116 = arith.negf %115 : vector<2x96xf32>
    %117 = math.exp %116 : vector<2x96xf32>
    %cst_21 = arith.constant 1.000000e+00 : f32
    %118 = vector.broadcast %cst_21 : f32 to vector<2x96xf32>
    %119 = arith.addf %118, %117 : vector<2x96xf32>
    %120 = arith.divf %118, %119 : vector<2x96xf32>
    %121 = vector.extract_strided_slice %114 {offsets = [0, 96], sizes = [2, 32], strides = [1, 1]} : vector<2x128xf32> to vector<2x32xf32>
    %122 = math.tanh %121 : vector<2x32xf32>
    %123 = vector.extract_strided_slice %120 {offsets = [0, 0], sizes = [2, 32], strides = [1, 1]} : vector<2x96xf32> to vector<2x32xf32>
    %124 = vector.extract_strided_slice %120 {offsets = [0, 32], sizes = [2, 32], strides = [1, 1]} : vector<2x96xf32> to vector<2x32xf32>
    %125 = vector.extract_strided_slice %120 {offsets = [0, 64], sizes = [2, 32], strides = [1, 1]} : vector<2x96xf32> to vector<2x32xf32>
    %126 = arith.mulf %124, %110 : vector<2x32xf32>
    %127 = arith.mulf %123, %122 : vector<2x32xf32>
    %128 = arith.addf %126, %127 : vector<2x32xf32>
    %129 = math.tanh %128 : vector<2x32xf32>
    %130 = arith.mulf %125, %129 : vector<2x32xf32>
    %cst_22 = arith.constant dense<0.000000e+00> : vector<2x128xf32>
    %131 = tpu.matmul %130, %20, %cst_22 {dimension_numbers = #tpu.dot_dimension_numbers<[1], [0], [0], [1], [0, 0, 1, 1], [], []>} : vector<2x32xf32>, vector<32x128xf32>, vector<2x128xf32> -> vector<2x128xf32>
    %132 = arith.addf %13, %131 : vector<2x128xf32>
    %133 = vector.extract_strided_slice %132 {offsets = [0, 0], sizes = [2, 96], strides = [1, 1]} : vector<2x128xf32> to vector<2x96xf32>
    %134 = arith.negf %133 : vector<2x96xf32>
    %135 = math.exp %134 : vector<2x96xf32>
    %cst_23 = arith.constant 1.000000e+00 : f32
    %136 = vector.broadcast %cst_23 : f32 to vector<2x96xf32>
    %137 = arith.addf %136, %135 : vector<2x96xf32>
    %138 = arith.divf %136, %137 : vector<2x96xf32>
    %139 = vector.extract_strided_slice %132 {offsets = [0, 96], sizes = [2, 32], strides = [1, 1]} : vector<2x128xf32> to vector<2x32xf32>
    %140 = math.tanh %139 : vector<2x32xf32>
    %141 = vector.extract_strided_slice %138 {offsets = [0, 0], sizes = [2, 32], strides = [1, 1]} : vector<2x96xf32> to vector<2x32xf32>
    %142 = vector.extract_strided_slice %138 {offsets = [0, 32], sizes = [2, 32], strides = [1, 1]} : vector<2x96xf32> to vector<2x32xf32>
    %143 = vector.extract_strided_slice %138 {offsets = [0, 64], sizes = [2, 32], strides = [1, 1]} : vector<2x96xf32> to vector<2x32xf32>
    %144 = arith.mulf %142, %128 : vector<2x32xf32>
    %145 = arith.mulf %141, %140 : vector<2x32xf32>
    %146 = arith.addf %144, %145 : vector<2x32xf32>
    %147 = math.tanh %146 : vector<2x32xf32>
    %148 = arith.mulf %143, %147 : vector<2x32xf32>
    %cst_24 = arith.constant dense<0.000000e+00> : vector<2x128xf32>
    %149 = tpu.matmul %148, %20, %cst_24 {dimension_numbers = #tpu.dot_dimension_numbers<[1], [0], [0], [1], [0, 0, 1, 1], [], []>} : vector<2x32xf32>, vector<32x128xf32>, vector<2x128xf32> -> vector<2x128xf32>
    %150 = arith.addf %12, %149 : vector<2x128xf32>
    %151 = vector.extract_strided_slice %150 {offsets = [0, 0], sizes = [2, 96], strides = [1, 1]} : vector<2x128xf32> to vector<2x96xf32>
    %152 = arith.negf %151 : vector<2x96xf32>
    %153 = math.exp %152 : vector<2x96xf32>
    %cst_25 = arith.constant 1.000000e+00 : f32
    %154 = vector.broadcast %cst_25 : f32 to vector<2x96xf32>
    %155 = arith.addf %154, %153 : vector<2x96xf32>
    %156 = arith.divf %154, %155 : vector<2x96xf32>
    %157 = vector.extract_strided_slice %150 {offsets = [0, 96], sizes = [2, 32], strides = [1, 1]} : vector<2x128xf32> to vector<2x32xf32>
    %158 = math.tanh %157 : vector<2x32xf32>
    %159 = vector.extract_strided_slice %156 {offsets = [0, 0], sizes = [2, 32], strides = [1, 1]} : vector<2x96xf32> to vector<2x32xf32>
    %160 = vector.extract_strided_slice %156 {offsets = [0, 32], sizes = [2, 32], strides = [1, 1]} : vector<2x96xf32> to vector<2x32xf32>
    %161 = vector.extract_strided_slice %156 {offsets = [0, 64], sizes = [2, 32], strides = [1, 1]} : vector<2x96xf32> to vector<2x32xf32>
    %162 = arith.mulf %160, %146 : vector<2x32xf32>
    %163 = arith.mulf %159, %158 : vector<2x32xf32>
    %164 = arith.addf %162, %163 : vector<2x32xf32>
    %165 = math.tanh %164 : vector<2x32xf32>
    %166 = arith.mulf %161, %165 : vector<2x32xf32>
    %c0_26 = arith.constant 0 : index
    %c0_27 = arith.constant 0 : index
    %167 = vector.load %arg5[%c0_26, %c0_27] : memref<32x32xf32, #tpu.memory_space<vmem>>, vector<32x32xf32>
    %cst_28 = arith.constant dense<0.000000e+00> : vector<2x32xf32>
    %168 = tpu.matmul %166, %167, %cst_28 {dimension_numbers = #tpu.dot_dimension_numbers<[1], [0], [0], [1], [0, 0, 1, 1], [], []>} : vector<2x32xf32>, vector<32x32xf32>, vector<2x32xf32> -> vector<2x32xf32>
    %c0_29 = arith.constant 0 : index
    %c0_30 = arith.constant 0 : index
    %169 = vector.load %arg6[%c0_29, %c0_30] : memref<1x32xf32, #tpu.memory_space<vmem>>, vector<1x32xf32>
    %170 = vector.broadcast %169 : vector<1x32xf32> to vector<2x32xf32>
    %171 = arith.addf %168, %170 : vector<2x32xf32>
    %cst_31 = arith.constant 0.000000e+00 : f32
    %172 = vector.broadcast %cst_31 : f32 to vector<2x32xf32>
    %173 = arith.maximumf %171, %172 : vector<2x32xf32>
    %c0_32 = arith.constant 0 : index
    %c0_33 = arith.constant 0 : index
    %174 = vector.load %arg7[%c0_32, %c0_33] : memref<32x32xf32, #tpu.memory_space<vmem>>, vector<32x32xf32>
    %cst_34 = arith.constant dense<0.000000e+00> : vector<2x32xf32>
    %175 = tpu.matmul %173, %174, %cst_34 {dimension_numbers = #tpu.dot_dimension_numbers<[1], [0], [0], [1], [0, 0, 1, 1], [], []>} : vector<2x32xf32>, vector<32x32xf32>, vector<2x32xf32> -> vector<2x32xf32>
    %c0_35 = arith.constant 0 : index
    %c0_36 = arith.constant 0 : index
    %176 = vector.load %arg8[%c0_35, %c0_36] : memref<1x32xf32, #tpu.memory_space<vmem>>, vector<1x32xf32>
    %177 = vector.broadcast %176 : vector<1x32xf32> to vector<2x32xf32>
    %178 = arith.addf %175, %177 : vector<2x32xf32>
    %179 = arith.addf %178, %166 : vector<2x32xf32>
    %c0_37 = arith.constant 0 : index
    %c0_38 = arith.constant 0 : index
    %180 = vector.load %arg9[%c0_37, %c0_38] : memref<1x32xf32, #tpu.memory_space<vmem>>, vector<1x32xf32>
    %181 = vector.broadcast %180 : vector<1x32xf32> to vector<2x32xf32>
    %182 = arith.mulf %179, %181 : vector<2x32xf32>
    %cst_39 = arith.constant dense<0.000000e+00> : vector<2xf32>
    %183 = vector.multi_reduction <add>, %182, %cst_39 [1] : vector<2x32xf32> to vector<2xf32>
    %184 = vector.shape_cast %183 : vector<2xf32> to vector<2x1xf32>
    %c0_40 = arith.constant 0 : index
    %c0_41 = arith.constant 0 : index
    %185 = vector.load %arg10[%c0_40, %c0_41] : memref<1x1xf32, #tpu.memory_space<vmem>>, vector<1x1xf32>
    %186 = vector.broadcast %185 : vector<1x1xf32> to vector<2x1xf32>
    %187 = arith.addf %184, %186 : vector<2x1xf32>
    %188 = arith.negf %187 : vector<2x1xf32>
    %189 = math.exp %188 : vector<2x1xf32>
    %cst_42 = arith.constant 1.000000e+00 : f32
    %190 = vector.broadcast %cst_42 : f32 to vector<2x1xf32>
    %191 = arith.addf %190, %189 : vector<2x1xf32>
    %192 = arith.divf %190, %191 : vector<2x1xf32>
    %c0_43 = arith.constant 0 : index
    %c0_44 = arith.constant 0 : index
    %193 = vector.load %arg11[%c0_43, %c0_44] : memref<2x1xf32, #tpu.memory_space<vmem>>, vector<2x1xf32>
    tpu.vector_store %arg11[%c0_43, %c0_44], %192 {strides = array<i32>} : memref<2x1xf32, #tpu.memory_space<vmem>>, vector<2x1xf32>,
    return
  }
  func.func @transform_0(%arg0: i32) -> (i32, i32) {
    %c0_i32 = arith.constant 0 : i32
    %c0_i32_0 = arith.constant 0 : i32
    %c0_i32_1 = arith.constant 0 : i32
    return %c0_i32, %c0_i32_0 : i32, i32
  }
  func.func @transform_1(%arg0: i32) -> (i32, i32) {
    %c0_i32 = arith.constant 0 : i32
    %c0_i32_0 = arith.constant 0 : i32
    %c0_i32_1 = arith.constant 0 : i32
    return %c0_i32, %c0_i32_0 : i32, i32
  }
  func.func @transform_2(%arg0: i32) -> (i32, i32) {
    %c0_i32 = arith.constant 0 : i32
    %c0_i32_0 = arith.constant 0 : i32
    %c0_i32_1 = arith.constant 0 : i32
    return %c0_i32, %c0_i32_0 : i32, i32
  }
  func.func @transform_3(%arg0: i32) -> (i32, i32) {
    %c0_i32 = arith.constant 0 : i32
    %c0_i32_0 = arith.constant 0 : i32
    %c0_i32_1 = arith.constant 0 : i32
    return %c0_i32, %c0_i32_0 : i32, i32
  }
  func.func @transform_4(%arg0: i32) -> (i32, i32) {
    %c0_i32 = arith.constant 0 : i32
    %c0_i32_0 = arith.constant 0 : i32
    %c0_i32_1 = arith.constant 0 : i32
    return %c0_i32, %c0_i32_0 : i32, i32
  }
  func.func @transform_5(%arg0: i32) -> (i32, i32) {
    %c0_i32 = arith.constant 0 : i32
    %c0_i32_0 = arith.constant 0 : i32
    %c0_i32_1 = arith.constant 0 : i32
    return %c0_i32, %c0_i32_0 : i32, i32
  }
  func.func @transform_6(%arg0: i32) -> (i32, i32) {
    %c0_i32 = arith.constant 0 : i32
    %c0_i32_0 = arith.constant 0 : i32
    %c0_i32_1 = arith.constant 0 : i32
    return %c0_i32, %c0_i32_0 : i32, i32
  }
  func.func @transform_7(%arg0: i32) -> (i32, i32) {
    %c0_i32 = arith.constant 0 : i32
    %c0_i32_0 = arith.constant 0 : i32
    %c0_i32_1 = arith.constant 0 : i32
    return %c0_i32, %c0_i32_0 : i32, i32
  }
  func.func @transform_8(%arg0: i32) -> (i32, i32) {
    %c0_i32 = arith.constant 0 : i32
    %c0_i32_0 = arith.constant 0 : i32
    %c0_i32_1 = arith.constant 0 : i32
    return %c0_i32, %c0_i32_0 : i32, i32
  }
  func.func @transform_9(%arg0: i32) -> (i32, i32) {
    %c0_i32 = arith.constant 0 : i32
    %c0_i32_0 = arith.constant 0 : i32
    %c0_i32_1 = arith.constant 0 : i32
    return %c0_i32, %c0_i32_0 : i32, i32
  }
  func.func @transform_10(%arg0: i32) -> (i32, i32) {
    %c0_i32 = arith.constant 0 : i32
    %c0_i32_0 = arith.constant 0 : i32
    %c0_i32_1 = arith.constant 0 : i32
    return %c0_i32, %c0_i32_0 : i32, i32
  }
}

</mosaic_0001>

<llo_original>
// kernel: tpu_custom_call.1
$region0: #{tpu_custom_call.1}
  #allocation0 [shape = 'u32[]', space=smem, size = 0x4, offset = 0x4, fixed_abs, tag = 'smem constant byte address 0x4 - core index']
  #allocation1 [shape = 'u32[144,128]{1,0:T(1,128)}', space=vmem, size = 0x12000, scoped, tag = 'internal scratch']
  #allocation2 [shape = 'f32[1,1]{1,0:T(1,128)S(1)}', space=vmem, size = 0x200, scoped, tag = 'scoped memory for tpu_custom_call.1']
  %s0 = inlined_call_operand.hbm [shape: f32[16,16], index: 0, kind: input, shape index: {}]
  %s1 = inlined_call_operand.hbm [shape: f32[48,128], index: 1, kind: input, shape index: {}]
  %s2 = inlined_call_operand.hbm [shape: f32[32,128], index: 2, kind: input, shape index: {}]
  %s3 = inlined_call_operand.vmem [shape: f32[1,128], index: 3, kind: input, shape index: {}]
  %s4 = inlined_call_operand.hbm [shape: f32[32,32], index: 4, kind: input, shape index: {}]
  %s5 = inlined_call_operand.vmem [shape: f32[1,32], index: 5, kind: input, shape index: {}]
  %s6 = inlined_call_operand.hbm [shape: f32[32,32], index: 6, kind: input, shape index: {}]
  %s7 = inlined_call_operand.vmem [shape: f32[1,32], index: 7, kind: input, shape index: {}]
  %s8 = inlined_call_operand.vmem [shape: f32[1,32], index: 8, kind: input, shape index: {}]
  %s9 = inlined_call_operand.<no memory space> [shape: f32[1,1], index: 9, kind: input, shape index: {}]
  %s10 = inlined_call_operand.vmem [shape: f32[2,1], index: 10, kind: output, shape index: {}]
  %s11 = sld [smem:[#allocation0]]
  $region70: #{tpu_custom_call.1} parent=0
    _
  %s13 = ssub.s32 1, %s11
  %s14 = scalar_select 0, %s13, %s11
  %v15 = vstv %s9
  %16 = vst [vmem:[#allocation2] sm:$0x1] %v15
  $region1: #{tpu_custom_call.1} parent=0
    #allocation3 [shape = 'u8[8192]{0}', space=vmem, size = 0x2000, scoped, tag = 'input window, operand 0, single buffered']
    #allocation4 [shape = 's32[1]{0}', space=sflag, size = 0x4, scoped, tag = 'scoped memory for tpu_custom_call.1']
    #allocation5 [shape = 'u8[24576]{0}', space=vmem, size = 0x6000, scoped, tag = 'input window, operand 1, single buffered']
    #allocation6 [shape = 's32[1]{0}', space=sflag, size = 0x4, scoped, tag = 'scoped memory for tpu_custom_call.1']
    #allocation7 [shape = 'u8[16384]{0}', space=vmem, size = 0x4000, scoped, tag = 'input window, operand 2, single buffered']
    #allocation8 [shape = 'u8[16384]{0}', space=vmem, size = 0x4000, scoped, tag = 'input window, operand 4, single buffered']
    #allocation9 [shape = 's32[1]{0}', space=sflag, size = 0x4, scoped, tag = 'scoped memory for tpu_custom_call.1']
    #allocation10 [shape = 'u8[16384]{0}', space=vmem, size = 0x4000, scoped, tag = 'input window, operand 6, single buffered']
    %17 = vsyncpa [#allocation4], 0
    %18 = vsyncpa [#allocation6], 0
    %19 = vsyncpa [#allocation9], 0
    // Predicated region
    $region2: #{tpu_custom_call.1} parent=1 // pred_check
      _
    $region3: #{tpu_custom_call.1} parent=1 // pred_check_branch
      %21 = sbr.rel (0) target = $region5
    $region4: #{tpu_custom_call.1} parent=1 // pred_region
      %s23 = ssub.s32 256, 256
      %24 = vsyncadd [#allocation4], %s23
      %s25 = sshll.u32 [#allocation3], 4
      %s26 = int_to_ptr.vmem [resolvable:$true] %s25
      %31 = dma.hbm_to_vmem [thread:$0]  %s0, 256, %s26, [#allocation4], 128, 128, 8
    $region5: #{tpu_custom_call.1} parent=1 // pred_fallthru
      _
    // Predicated region
    $region6: #{tpu_custom_call.1} parent=1 // pred_check
      _
    $region7: #{tpu_custom_call.1} parent=1 // pred_check_branch
      %33 = sbr.rel (0) target = $region9
    $region8: #{tpu_custom_call.1} parent=1 // pred_region
      %s35 = ssub.s32 768, 768
      %36 = vsyncadd [#allocation6], %s35
      %s37 = sshll.u32 [#allocation5], 4
      %s38 = int_to_ptr.vmem [resolvable:$true] %s37
      %43 = dma.hbm_to_vmem [thread:$0]  %s1, 768, %s38, [#allocation6], 128, 128, 8
    $region9: #{tpu_custom_call.1} parent=1 // pred_fallthru
      _
    // Predicated region
    $region10: #{tpu_custom_call.1} parent=1 // pred_check
      _
    $region11: #{tpu_custom_call.1} parent=1 // pred_check_branch
      %45 = sbr.rel (0) target = $region13
    $region12: #{tpu_custom_call.1} parent=1 // pred_region
      %s47 = ssub.s32 512, 512
      %48 = vsyncadd [#allocation6], %s47
      %s49 = sshll.u32 [#allocation7], 4
      %s50 = int_to_ptr.vmem [resolvable:$true] %s49
      %55 = dma.hbm_to_vmem [thread:$0]  %s2, 512, %s50, [#allocation6], 128, 128, 8
    $region13: #{tpu_custom_call.1} parent=1 // pred_fallthru
      _
    // Predicated region
    $region14: #{tpu_custom_call.1} parent=1 // pred_check
      _
    $region15: #{tpu_custom_call.1} parent=1 // pred_check_branch
      %57 = sbr.rel (0) target = $region17
    $region16: #{tpu_custom_call.1} parent=1 // pred_region
      _
    $region17: #{tpu_custom_call.1} parent=1 // pred_fallthru
      _
    // Predicated region
    $region18: #{tpu_custom_call.1} parent=1 // pred_check
      _
    $region19: #{tpu_custom_call.1} parent=1 // pred_check_branch
      %59 = sbr.rel (0) target = $region21
    $region20: #{tpu_custom_call.1} parent=1 // pred_region
      %s61 = ssub.s32 512, 512
      %62 = vsyncadd [#allocation9], %s61
      %s63 = sshll.u32 [#allocation8], 4
      %s64 = int_to_ptr.vmem [resolvable:$true] %s63
      %69 = dma.hbm_to_vmem [thread:$0]  %s4, 512, %s64, [#allocation9], 128, 128, 8
    $region21: #{tpu_custom_call.1} parent=1 // pred_fallthru
      _
    // Predicated region
    $region22: #{tpu_custom_call.1} parent=1 // pred_check
      _
    $region23: #{tpu_custom_call.1} parent=1 // pred_check_branch
      %71 = sbr.rel (0) target = $region25
    $region24: #{tpu_custom_call.1} parent=1 // pred_region
      _
    $region25: #{tpu_custom_call.1} parent=1 // pred_fallthru
      _
    // Predicated region
    $region26: #{tpu_custom_call.1} parent=1 // pred_check
      _
    $region27: #{tpu_custom_call.1} parent=1 // pred_check_branch
      %73 = sbr.rel (0) target = $region29
    $region28: #{tpu_custom_call.1} parent=1 // pred_region
      %s75 = ssub.s32 512, 512
      %76 = vsyncadd [#allocation9], %s75
      %s77 = sshll.u32 [#allocation10], 4
      %s78 = int_to_ptr.vmem [resolvable:$true] %s77
      %83 = dma.hbm_to_vmem [thread:$0]  %s6, 512, %s78, [#allocation9], 128, 128, 8
    $region29: #{tpu_custom_call.1} parent=1 // pred_fallthru
      _
    // Predicated region
    $region30: #{tpu_custom_call.1} parent=1 // pred_check
      _
    $region31: #{tpu_custom_call.1} parent=1 // pred_check_branch
      %85 = sbr.rel (0) target = $region33
    $region32: #{tpu_custom_call.1} parent=1 // pred_region
      _
    $region33: #{tpu_custom_call.1} parent=1 // pred_fallthru
      _
    // Predicated region
    $region34: #{tpu_custom_call.1} parent=1 // pred_check
      _
    $region35: #{tpu_custom_call.1} parent=1 // pred_check_branch
      %87 = sbr.rel (0) target = $region37
    $region36: #{tpu_custom_call.1} parent=1 // pred_region
      _
    $region37: #{tpu_custom_call.1} parent=1 // pred_fallthru
      _
    // Predicated region
    $region38: #{tpu_custom_call.1} parent=1 // pred_check
      _
    $region39: #{tpu_custom_call.1} parent=1 // pred_check_branch
      %89 = sbr.rel (0) target = $region41
    $region40: #{tpu_custom_call.1} parent=1 // pred_region
      _
    $region41: #{tpu_custom_call.1} parent=1 // pred_fallthru
      _
    // Predicated region
    $region42: #{tpu_custom_call.1} parent=1 // pred_check
      _
    $region43: #{tpu_custom_call.1} parent=1 // pred_check_branch
      %91 = sbr.rel (0) target = $region45
    $region44: #{tpu_custom_call.1} parent=1 // pred_region
      %92 = dma.done [#allocation4], 256
    $region45: #{tpu_custom_call.1} parent=1 // pred_fallthru
      _
    // Predicated region
    $region46: #{tpu_custom_call.1} parent=1 // pred_check
      _
    $region47: #{tpu_custom_call.1} parent=1 // pred_check_branch
      %94 = sbr.rel (0) target = $region49
    $region48: #{tpu_custom_call.1} parent=1 // pred_region
      %95 = dma.done [#allocation6], 768
    $region49: #{tpu_custom_call.1} parent=1 // pred_fallthru
      _
    // Predicated region
    $region50: #{tpu_custom_call.1} parent=1 // pred_check
      _
    $region51: #{tpu_custom_call.1} parent=1 // pred_check_branch
      %97 = sbr.rel (0) target = $region53
    $region52: #{tpu_custom_call.1} parent=1 // pred_region
      %98 = dma.done [#allocation6], 512
    $region53: #{tpu_custom_call.1} parent=1 // pred_fallthru
      _
    // Predicated region
    $region54: #{tpu_custom_call.1} parent=1 // pred_check
      _
    $region55: #{tpu_custom_call.1} parent=1 // pred_check_branch
      %100 = sbr.rel (0) target = $region57
    $region56: #{tpu_custom_call.1} parent=1 // pred_region
      %101 = dma.done [#allocation9], 512
    $region57: #{tpu_custom_call.1} parent=1 // pred_fallthru
      _
    // Predicated region
    $region58: #{tpu_custom_call.1} parent=1 // pred_check
      _
    $region59: #{tpu_custom_call.1} parent=1 // pred_check_branch
      %103 = sbr.rel (0) target = $region61
    $region60: #{tpu_custom_call.1} parent=1 // pred_region
      %104 = dma.done [#allocation9], 512
    $region61: #{tpu_custom_call.1} parent=1 // pred_fallthru
      _
    %v105 = vld [vmem:[#allocation3] sm:$0xff]
    %v106 = vld [vmem:[#allocation3 + $0x8] sm:$0xff]
    %vm109 = vcmask 1041408
    %v110 = vrot.slane %v105, 6
    %v111 = vrot.slane %v106, 6
    %v112 = vsel %vm109, %v110, %v111
    %v116 = vsel %vm109, 0.0, %v110
    %v117 = vsel %vm109, %v111, 0.0
    %vm120 = vcmask 1045504
    %v121 = vrot.slane %v116, 2
    %v122 = vrot.slane %v112, 2
    %v123 = vsel %vm120, %v121, %v122
    %v124 = vrot.slane %v117, 2
    %v125 = vsel %vm120, %v122, %v124
    %126 = vrot.lane.b32.xlu0 %v123, 16
    %v127 = vpop.permute.xlu0 %126
    %128 = vrot.lane.b32.xlu0 %v125, 16
    %v129 = vpop.permute.xlu0 %128
    %vm132 = vcmask 1043456
    %v133 = vrot.slane %v116, 4
    %v134 = vrot.slane %v112, 4
    %v135 = vsel %vm132, %v133, %v134
    %v136 = vrot.slane %v117, 4
    %v137 = vsel %vm132, %v134, %v136
    %138 = vrot.lane.b32.xlu0 %v135, 32
    %v139 = vpop.permute.xlu0 %138
    %140 = vrot.lane.b32.xlu0 %v137, 32
    %v141 = vpop.permute.xlu0 %140
    %vm144 = vcmask 130048
    %v145 = vsel %vm144, %v116, %v127
    %v146 = vsel %vm144, %v112, %v129
    %vm147 = vcmask 261120
    %v148 = vsel %vm147, %v145, %v139
    %v149 = vsel %vm147, %v146, %v141
    %v150 = vld [vmem:[#allocation5] sm:$0xff]
    %v151 = vld [vmem:[#allocation5 + $0x8] sm:$0xff]
    %v152 = vld [vmem:[#allocation5 + $0x10] sm:$0xff]
    %v153 = vld [vmem:[#allocation5 + $0x18] sm:$0xff]
    %v154 = vld [vmem:[#allocation5 + $0x20] sm:$0xff]
    %v155 = vld [vmem:[#allocation5 + $0x28] sm:$0xff]
    %v156 = vld [vmem:[%s3] sm:$0x1]
    %v158 = vlaneseq
    %v159 = vshrl.u32 %v158, 7
    %v160 = vsub.s32 0, %v159
    %v161 = vrot.slane %v156, %v160
    %vm163 = vcmask 392192
    %v165 = vsel %vm163, %v148, 0
    %v168 = vsel %vm163, %v149, 0
    %170 = vmatprep.subr.mxu0 0.0
    %171 = vmatpush1.msra.mxu0 %v150
    %172 = vmatprep.subr.mxu0 0.0
    %173 = vmatpush1.msra.mxu0 %v151
    %174 = vmatprep.subr.mxu0 0.0
    %175 = vmatpush1.msra.mxu0 %v152
    %176 = vmatprep.subr.mxu0 0.0
    %177 = vmatpush1.msra.mxu0 %v153
    %178 = vmatprep.subr.mxu0 0.0
    %179 = vmatpush1.msra.mxu0 %v154
    %180 = vmatprep.subr.mxu0 0.0
    %181 = vmatpush1.msra.mxu0 %v155
    %182 = vmatprep.subr.mxu0 0.0
    %183 = vmatpush1.msra.mxu0 0.0
    %184 = vmatprep.subr.mxu0 0.0
    %185 = vmatpush1.msra.mxu0 0.0
    %186 = vmatprep.subr.mxu0 0.0
    %187 = vmatpush1.msra.mxu0 0.0
    %188 = vmatprep.subr.mxu0 0.0
    %189 = vmatpush1.msra.mxu0 0.0
    %190 = vmatprep.subr.mxu0 0.0
    %191 = vmatpush1.msra.mxu0 0.0
    %192 = vmatprep.subr.mxu0 0.0
    %193 = vmatpush1.msra.mxu0 0.0
    %194 = vmatprep.subr.mxu0 0.0
    %195 = vmatpush1.msra.mxu0 0.0
    %196 = vmatprep.subr.mxu0 0.0
    %197 = vmatpush1.msra.mxu0 0.0
    %198 = vmatprep.subr.mxu0 0.0
    %199 = vmatpush1.msra.mxu0 0.0
    %200 = vmatprep.subr.mxu0 0.0
    %201 = vmatpush1.msra.mxu0 0.0
    %202 = vmatprep.subr.mxu0 0.0
    %203 = vmatpush1.msra.mxu0 0.0
    %204 = vmatprep.subr.mxu0 0.0
    %205 = vmatpush1.msra.mxu0 0.0
    %206 = vmatprep.subr.mxu0 0.0
    %207 = vmatpush1.msra.mxu0 0.0
    %208 = vmatprep.subr.mxu0 0.0
    %209 = vmatpush1.msra.mxu0 0.0
    %210 = vmatprep.subr.mxu0 0.0
    %211 = vmatpush1.msra.mxu0 0.0
    %212 = vmatprep.subr.mxu0 0.0
    %213 = vmatpush1.msra.mxu0 0.0
    %214 = vmatprep.subr.mxu0 0.0
    %215 = vmatpush1.msra.mxu0 0.0
    %216 = vmatprep.subr.mxu0 0.0
    %217 = vmatpush1.msra.mxu0 0.0
    %218 = vmatprep.subr.mxu0 0.0
    %219 = vmatpush1.msra.mxu0 0.0
    %220 = vmatprep.subr.mxu0 0.0
    %221 = vmatpush1.msra.mxu0 0.0
    %222 = vmatprep.subr.mxu0 0.0
    %223 = vmatpush1.msra.mxu0 0.0
    %224 = vmatprep.subr.mxu0 0.0
    %225 = vmatpush1.msra.mxu0 0.0
    %226 = vmatprep.subr.mxu0 0.0
    %227 = vmatpush1.msra.mxu0 0.0
    %228 = vmatprep.subr.mxu0 0.0
    %229 = vmatpush1.msra.mxu0 0.0
    %230 = vmatprep.subr.mxu0 0.0
    %231 = vmatpush1.msra.mxu0 0.0
    %232 = vmatprep.subr.mxu0 0.0
    %233 = vmatpush1.msra.mxu0 0.0
    %234 = vmatprep.mubr.f32.mxu0 0.0
    %235 = vmatmul.mubr.f32.gmra.mrb[0].mxu0 %v165
    %v236 = vpop.f32.mrb[0].mxu0
    %v237 = vadd.f32 %v161, %v236
    %v238 = vpop.f32.mrb[0].mxu0
    %239 = vmatprep.mubr.f32.mxu0 0.0
    %240 = vmatmul.mubr.f32.gmra.mrb[0].mxu0 %v168
    %v241 = vpop.f32.mrb[0].mxu0
    %v242 = vadd.f32 %v161, %v241
    %v243 = vpop.f32.mrb[0].mxu0
    %244 = vdwg.mxu0
    %v245 = vld [vmem:[#allocation7] sm:$0xff]
    %v246 = vld [vmem:[#allocation7 + $0x8] sm:$0xff]
    %v247 = vld [vmem:[#allocation7 + $0x10] sm:$0xff]
    %v248 = vld [vmem:[#allocation7 + $0x18] sm:$0xff]
    %v250 = vsel %vm147, 0.0, 0
    %252 = vmatprep.subr.mxu0 0.0
    %253 = vmatpush1.msra.mxu0 %v245
    %254 = vmatprep.subr.mxu0 0.0
    %255 = vmatpush1.msra.mxu0 %v246
    %256 = vmatprep.subr.mxu0 0.0
    %257 = vmatpush1.msra.mxu0 %v247
    %258 = vmatprep.subr.mxu0 0.0
    %259 = vmatpush1.msra.mxu0 %v248
    %260 = vmatprep.subr.mxu0 0.0
    %261 = vmatpush1.msra.mxu0 0.0
    %262 = vmatprep.subr.mxu0 0.0
    %263 = vmatpush1.msra.mxu0 0.0
    %264 = vmatprep.subr.mxu0 0.0
    %265 = vmatpush1.msra.mxu0 0.0
    %266 = vmatprep.subr.mxu0 0.0
    %267 = vmatpush1.msra.mxu0 0.0
    %268 = vmatprep.subr.mxu0 0.0
    %269 = vmatpush1.msra.mxu0 0.0
    %270 = vmatprep.subr.mxu0 0.0
    %271 = vmatpush1.msra.mxu0 0.0
    %272 = vmatprep.subr.mxu0 0.0
    %273 = vmatpush1.msra.mxu0 0.0
    %274 = vmatprep.subr.mxu0 0.0
    %275 = vmatpush1.msra.mxu0 0.0
    %276 = vmatprep.subr.mxu0 0.0
    %277 = vmatpush1.msra.mxu0 0.0
    %278 = vmatprep.subr.mxu0 0.0
    %279 = vmatpush1.msra.mxu0 0.0
    %280 = vmatprep.subr.mxu0 0.0
    %281 = vmatpush1.msra.mxu0 0.0
    %282 = vmatprep.subr.mxu0 0.0
    %283 = vmatpush1.msra.mxu0 0.0
    %284 = vmatprep.subr.mxu0 0.0
    %285 = vmatpush1.msra.mxu0 0.0
    %286 = vmatprep.subr.mxu0 0.0
    %287 = vmatpush1.msra.mxu0 0.0
    %288 = vmatprep.subr.mxu0 0.0
    %289 = vmatpush1.msra.mxu0 0.0
    %290 = vmatprep.subr.mxu0 0.0
    %291 = vmatpush1.msra.mxu0 0.0
    %292 = vmatprep.subr.mxu0 0.0
    %293 = vmatpush1.msra.mxu0 0.0
    %294 = vmatprep.subr.mxu0 0.0
    %295 = vmatpush1.msra.mxu0 0.0
    %296 = vmatprep.subr.mxu0 0.0
    %297 = vmatpush1.msra.mxu0 0.0
    %298 = vmatprep.subr.mxu0 0.0
    %299 = vmatpush1.msra.mxu0 0.0
    %300 = vmatprep.subr.mxu0 0.0
    %301 = vmatpush1.msra.mxu0 0.0
    %302 = vmatprep.subr.mxu0 0.0
    %303 = vmatpush1.msra.mxu0 0.0
    %304 = vmatprep.subr.mxu0 0.0
    %305 = vmatpush1.msra.mxu0 0.0
    %306 = vmatprep.subr.mxu0 0.0
    %307 = vmatpush1.msra.mxu0 0.0
    %308 = vmatprep.subr.mxu0 0.0
    %309 = vmatpush1.msra.mxu0 0.0
    %310 = vmatprep.subr.mxu0 0.0
    %311 = vmatpush1.msra.mxu0 0.0
    %312 = vmatprep.subr.mxu0 0.0
    %313 = vmatpush1.msra.mxu0 0.0
    %314 = vmatprep.subr.mxu0 0.0
    %315 = vmatpush1.msra.mxu0 0.0
    %316 = vmatprep.mubr.f32.mxu0 0.0
    %317 = vmatmul.mubr.f32.gmra.mrb[0].mxu0 %v250
    %v318 = vpop.f32.mrb[0].mxu0
    %v319 = vadd.f32 0.0, %v318
    %v320 = vpop.f32.mrb[0].mxu0
    %321 = vdwg.mxu0
    %v323 = vrot.slane %v319, 2
    %v325 = vadd.f32 %v242, %v323
    %v326 = vxor.u32 %v325, 2147483648
    %v327 = vmul.f32 %v326, 1.442695
    %v328 = vpow.pop %v327
    %v329 = vadd.f32 %v328, 1.0
    %v330 = vrcp.pop %v329
    %v331 = vmul.f32 1.0, %v330
    %v332 = vtanh.pop %v325
    %v333 = vmul.f32 %v331, 0.0
    %335 = vrot.lane.b32.xlu0 %v332, 32
    %v336 = vpop.permute.xlu0 %335
    %v338 = vmul.f32 %v331, %v336
    %340 = vrot.lane.b32.xlu0 %v338, 32
    %v341 = vpop.permute.xlu0 %340
    %v343 = vadd.f32 %v333, %v341
    %v344 = vtanh.pop %v343
    %346 = vrot.lane.b32.xlu0 %v344, 32
    %v347 = vpop.permute.xlu0 %346
    %v349 = vmul.f32 %v331, %v347
    %v351 = vrot.slane %v349, 6
    %352 = vrot.lane.b32.xlu0 %v351, 64
    %v353 = vpop.permute.xlu0 %352
    %v354 = vsel %vm147, %v353, 0
    %356 = vmatprep.subr.mxu0 0.0
    %357 = vmatpush1.msra.mxu0 %v245
    %358 = vmatprep.subr.mxu0 0.0
    %359 = vmatpush1.msra.mxu0 %v246
    %360 = vmatprep.subr.mxu0 0.0
    %361 = vmatpush1.msra.mxu0 %v247
    %362 = vmatprep.subr.mxu0 0.0
    %363 = vmatpush1.msra.mxu0 %v248
    %364 = vmatprep.subr.mxu0 0.0
    %365 = vmatpush1.msra.mxu0 0.0
    %366 = vmatprep.subr.mxu0 0.0
    %367 = vmatpush1.msra.mxu0 0.0
    %368 = vmatprep.subr.mxu0 0.0
    %369 = vmatpush1.msra.mxu0 0.0
    %370 = vmatprep.subr.mxu0 0.0
    %371 = vmatpush1.msra.mxu0 0.0
    %372 = vmatprep.subr.mxu0 0.0
    %373 = vmatpush1.msra.mxu0 0.0
    %374 = vmatprep.subr.mxu0 0.0
    %375 = vmatpush1.msra.mxu0 0.0
    %376 = vmatprep.subr.mxu0 0.0
    %377 = vmatpush1.msra.mxu0 0.0
    %378 = vmatprep.subr.mxu0 0.0
    %379 = vmatpush1.msra.mxu0 0.0
    %380 = vmatprep.subr.mxu0 0.0
    %381 = vmatpush1.msra.mxu0 0.0
    %382 = vmatprep.subr.mxu0 0.0
    %383 = vmatpush1.msra.mxu0 0.0
    %384 = vmatprep.subr.mxu0 0.0
    %385 = vmatpush1.msra.mxu0 0.0
    %386 = vmatprep.subr.mxu0 0.0
    %387 = vmatpush1.msra.mxu0 0.0
    %388 = vmatprep.subr.mxu0 0.0
    %389 = vmatpush1.msra.mxu0 0.0
    %390 = vmatprep.subr.mxu0 0.0
    %391 = vmatpush1.msra.mxu0 0.0
    %392 = vmatprep.subr.mxu0 0.0
    %393 = vmatpush1.msra.mxu0 0.0
    %394 = vmatprep.subr.mxu0 0.0
    %395 = vmatpush1.msra.mxu0 0.0
    %396 = vmatprep.subr.mxu0 0.0
    %397 = vmatpush1.msra.mxu0 0.0
    %398 = vmatprep.subr.mxu0 0.0
    %399 = vmatpush1.msra.mxu0 0.0
    %400 = vmatprep.subr.mxu0 0.0
    %401 = vmatpush1.msra.mxu0 0.0
    %402 = vmatprep.subr.mxu0 0.0
    %403 = vmatpush1.msra.mxu0 0.0
    %404 = vmatprep.subr.mxu0 0.0
    %405 = vmatpush1.msra.mxu0 0.0
    %406 = vmatprep.subr.mxu0 0.0
    %407 = vmatpush1.msra.mxu0 0.0
    %408 = vmatprep.subr.mxu0 0.0
    %409 = vmatpush1.msra.mxu0 0.0
    %410 = vmatprep.subr.mxu0 0.0
    %411 = vmatpush1.msra.mxu0 0.0
    %412 = vmatprep.subr.mxu0 0.0
    %413 = vmatpush1.msra.mxu0 0.0
    %414 = vmatprep.subr.mxu0 0.0
    %415 = vmatpush1.msra.mxu0 0.0
    %416 = vmatprep.subr.mxu0 0.0
    %417 = vmatpush1.msra.mxu0 0.0
    %418 = vmatprep.subr.mxu0 0.0
    %419 = vmatpush1.msra.mxu0 0.0
    %420 = vmatprep.mubr.f32.mxu0 0.0
    %421 = vmatmul.mubr.f32.gmra.mrb[0].mxu0 %v354
    %v422 = vpop.f32.mrb[0].mxu0
    %v423 = vadd.f32 0.0, %v422
    %v424 = vpop.f32.mrb[0].mxu0
    %425 = vdwg.mxu0
    %v427 = vrot.slane %v423, 4
    %v429 = vadd.f32 %v242, %v427
    %v430 = vxor.u32 %v429, 2147483648
    %v431 = vmul.f32 %v430, 1.442695
    %v432 = vpow.pop %v431
    %v433 = vadd.f32 %v432, 1.0
    %v434 = vrcp.pop %v433
    %v435 = vmul.f32 1.0, %v434
    %v436 = vtanh.pop %v429
    %v438 = vrot.slane %v343, 2
    %v440 = vmul.f32 %v435, %v438
    %442 = vrot.lane.b32.xlu0 %v436, 32
    %v443 = vpop.permute.xlu0 %442
    %v445 = vmul.f32 %v435, %v443
    %447 = vrot.lane.b32.xlu0 %v445, 32
    %v448 = vpop.permute.xlu0 %447
    %v450 = vadd.f32 %v440, %v448
    %v451 = vtanh.pop %v450
    %453 = vrot.lane.b32.xlu0 %v451, 32
    %v454 = vpop.permute.xlu0 %453
    %v456 = vmul.f32 %v435, %v454
    %v458 = vrot.slane %v456, 4
    %459 = vrot.lane.b32.xlu0 %v458, 64
    %v460 = vpop.permute.xlu0 %459
    %v461 = vsel %vm147, %v460, 0
    %463 = vmatprep.subr.mxu0 0.0
    %464 = vmatpush1.msra.mxu0 %v245
    %465 = vmatprep.subr.mxu0 0.0
    %466 = vmatpush1.msra.mxu0 %v246
    %467 = vmatprep.subr.mxu0 0.0
    %468 = vmatpush1.msra.mxu0 %v247
    %469 = vmatprep.subr.mxu0 0.0
    %470 = vmatpush1.msra.mxu0 %v248
    %471 = vmatprep.subr.mxu0 0.0
    %472 = vmatpush1.msra.mxu0 0.0
    %473 = vmatprep.subr.mxu0 0.0
    %474 = vmatpush1.msra.mxu0 0.0
    %475 = vmatprep.subr.mxu0 0.0
    %476 = vmatpush1.msra.mxu0 0.0
    %477 = vmatprep.subr.mxu0 0.0
    %478 = vmatpush1.msra.mxu0 0.0
    %479 = vmatprep.subr.mxu0 0.0
    %480 = vmatpush1.msra.mxu0 0.0
    %481 = vmatprep.subr.mxu0 0.0
    %482 = vmatpush1.msra.mxu0 0.0
    %483 = vmatprep.subr.mxu0 0.0
    %484 = vmatpush1.msra.mxu0 0.0
    %485 = vmatprep.subr.mxu0 0.0
    %486 = vmatpush1.msra.mxu0 0.0
    %487 = vmatprep.subr.mxu0 0.0
    %488 = vmatpush1.msra.mxu0 0.0
    %489 = vmatprep.subr.mxu0 0.0
    %490 = vmatpush1.msra.mxu0 0.0
    %491 = vmatprep.subr.mxu0 0.0
    %492 = vmatpush1.msra.mxu0 0.0
    %493 = vmatprep.subr.mxu0 0.0
    %494 = vmatpush1.msra.mxu0 0.0
    %495 = vmatprep.subr.mxu0 0.0
    %496 = vmatpush1.msra.mxu0 0.0
    %497 = vmatprep.subr.mxu0 0.0
    %498 = vmatpush1.msra.mxu0 0.0
    %499 = vmatprep.subr.mxu0 0.0
    %500 = vmatpush1.msra.mxu0 0.0
    %501 = vmatprep.subr.mxu0 0.0
    %502 = vmatpush1.msra.mxu0 0.0
    %503 = vmatprep.subr.mxu0 0.0
    %504 = vmatpush1.msra.mxu0 0.0
    %505 = vmatprep.subr.mxu0 0.0
    %506 = vmatpush1.msra.mxu0 0.0
    %507 = vmatprep.subr.mxu0 0.0
    %508 = vmatpush1.msra.mxu0 0.0
    %509 = vmatprep.subr.mxu0 0.0
    %510 = vmatpush1.msra.mxu0 0.0
    %511 = vmatprep.subr.mxu0 0.0
    %512 = vmatpush1.msra.mxu0 0.0
    %513 = vmatprep.subr.mxu0 0.0
    %514 = vmatpush1.msra.mxu0 0.0
    %515 = vmatprep.subr.mxu0 0.0
    %516 = vmatpush1.msra.mxu0 0.0
    %517 = vmatprep.subr.mxu0 0.0
    %518 = vmatpush1.msra.mxu0 0.0
    %519 = vmatprep.subr.mxu0 0.0
    %520 = vmatpush1.msra.mxu0 0.0
    %521 = vmatprep.subr.mxu0 0.0
    %522 = vmatpush1.msra.mxu0 0.0
    %523 = vmatprep.subr.mxu0 0.0
    %524 = vmatpush1.msra.mxu0 0.0
    %525 = vmatprep.subr.mxu0 0.0
    %526 = vmatpush1.msra.mxu0 0.0
    %527 = vmatprep.mubr.f32.mxu0 0.0
    %528 = vmatmul.mubr.f32.gmra.mrb[0].mxu0 %v461
    %v529 = vpop.f32.mrb[0].mxu0
    %v530 = vadd.f32 0.0, %v529
    %v531 = vpop.f32.mrb[0].mxu0
    %532 = vdwg.mxu0
    %v534 = vrot.slane %v530, 6
    %v536 = vadd.f32 %v242, %v534
    %v537 = vxor.u32 %v536, 2147483648
    %v538 = vmul.f32 %v537, 1.442695
    %v539 = vpow.pop %v538
    %v540 = vadd.f32 %v539, 1.0
    %v541 = vrcp.pop %v540
    %v542 = vmul.f32 1.0, %v541
    %v543 = vtanh.pop %v536
    %v545 = vrot.slane %v450, 2
    %v547 = vmul.f32 %v542, %v545
    %549 = vrot.lane.b32.xlu0 %v543, 32
    %v550 = vpop.permute.xlu0 %549
    %v552 = vmul.f32 %v542, %v550
    %554 = vrot.lane.b32.xlu0 %v552, 32
    %v555 = vpop.permute.xlu0 %554
    %v557 = vadd.f32 %v547, %v555
    %v558 = vtanh.pop %v557
    %560 = vrot.lane.b32.xlu0 %v558, 32
    %v561 = vpop.permute.xlu0 %560
    %v563 = vmul.f32 %v542, %v561
    %v565 = vrot.slane %v563, 2
    %566 = vrot.lane.b32.xlu0 %v565, 64
    %v567 = vpop.permute.xlu0 %566
    %v568 = vsel %vm147, %v567, 0
    %570 = vmatprep.subr.mxu0 0.0
    %571 = vmatpush1.msra.mxu0 %v245
    %572 = vmatprep.subr.mxu0 0.0
    %573 = vmatpush1.msra.mxu0 %v246
    %574 = vmatprep.subr.mxu0 0.0
    %575 = vmatpush1.msra.mxu0 %v247
    %576 = vmatprep.subr.mxu0 0.0
    %577 = vmatpush1.msra.mxu0 %v248
    %578 = vmatprep.subr.mxu0 0.0
    %579 = vmatpush1.msra.mxu0 0.0
    %580 = vmatprep.subr.mxu0 0.0
    %581 = vmatpush1.msra.mxu0 0.0
    %582 = vmatprep.subr.mxu0 0.0
    %583 = vmatpush1.msra.mxu0 0.0
    %584 = vmatprep.subr.mxu0 0.0
    %585 = vmatpush1.msra.mxu0 0.0
    %586 = vmatprep.subr.mxu0 0.0
    %587 = vmatpush1.msra.mxu0 0.0
    %588 = vmatprep.subr.mxu0 0.0
    %589 = vmatpush1.msra.mxu0 0.0
    %590 = vmatprep.subr.mxu0 0.0
    %591 = vmatpush1.msra.mxu0 0.0
    %592 = vmatprep.subr.mxu0 0.0
    %593 = vmatpush1.msra.mxu0 0.0
    %594 = vmatprep.subr.mxu0 0.0
    %595 = vmatpush1.msra.mxu0 0.0
    %596 = vmatprep.subr.mxu0 0.0
    %597 = vmatpush1.msra.mxu0 0.0
    %598 = vmatprep.subr.mxu0 0.0
    %599 = vmatpush1.msra.mxu0 0.0
    %600 = vmatprep.subr.mxu0 0.0
    %601 = vmatpush1.msra.mxu0 0.0
    %602 = vmatprep.subr.mxu0 0.0
    %603 = vmatpush1.msra.mxu0 0.0
    %604 = vmatprep.subr.mxu0 0.0
    %605 = vmatpush1.msra.mxu0 0.0
    %606 = vmatprep.subr.mxu0 0.0
    %607 = vmatpush1.msra.mxu0 0.0
    %608 = vmatprep.subr.mxu0 0.0
    %609 = vmatpush1.msra.mxu0 0.0
    %610 = vmatprep.subr.mxu0 0.0
    %611 = vmatpush1.msra.mxu0 0.0
    %612 = vmatprep.subr.mxu0 0.0
    %613 = vmatpush1.msra.mxu0 0.0
    %614 = vmatprep.subr.mxu0 0.0
    %615 = vmatpush1.msra.mxu0 0.0
    %616 = vmatprep.subr.mxu0 0.0
    %617 = vmatpush1.msra.mxu0 0.0
    %618 = vmatprep.subr.mxu0 0.0
    %619 = vmatpush1.msra.mxu0 0.0
    %620 = vmatprep.subr.mxu0 0.0
    %621 = vmatpush1.msra.mxu0 0.0
    %622 = vmatprep.subr.mxu0 0.0
    %623 = vmatpush1.msra.mxu0 0.0
    %624 = vmatprep.subr.mxu0 0.0
    %625 = vmatpush1.msra.mxu0 0.0
    %626 = vmatprep.subr.mxu0 0.0
    %627 = vmatpush1.msra.mxu0 0.0
    %628 = vmatprep.subr.mxu0 0.0
    %629 = vmatpush1.msra.mxu0 0.0
    %630 = vmatprep.subr.mxu0 0.0
    %631 = vmatpush1.msra.mxu0 0.0
    %632 = vmatprep.subr.mxu0 0.0
    %633 = vmatpush1.msra.mxu0 0.0
    %634 = vmatprep.mubr.f32.mxu0 0.0
    %635 = vmatmul.mubr.f32.gmra.mrb[0].mxu0 %v568
    %v636 = vpop.f32.mrb[0].mxu0
    %v637 = vadd.f32 0.0, %v636
    %v638 = vpop.f32.mrb[0].mxu0
    %639 = vdwg.mxu0
    %v640 = vadd.f32 %v242, %v637
    %v641 = vxor.u32 %v640, 2147483648
    %v642 = vmul.f32 %v641, 1.442695
    %v643 = vpow.pop %v642
    %v644 = vadd.f32 %v643, 1.0
    %v645 = vrcp.pop %v644
    %v646 = vmul.f32 1.0, %v645
    %v647 = vtanh.pop %v640
    %v649 = vrot.slane %v557, 2
    %v651 = vmul.f32 %v646, %v649
    %653 = vrot.lane.b32.xlu0 %v647, 32
    %v654 = vpop.permute.xlu0 %653
    %v656 = vmul.f32 %v646, %v654
    %658 = vrot.lane.b32.xlu0 %v656, 32
    %v659 = vpop.permute.xlu0 %658
    %v661 = vadd.f32 %v651, %v659
    %v662 = vtanh.pop %v661
    %664 = vrot.lane.b32.xlu0 %v662, 32
    %v665 = vpop.permute.xlu0 %664
    %v667 = vmul.f32 %v646, %v665
    %669 = vrot.lane.b32.xlu0 %v667, 64
    %v670 = vpop.permute.xlu0 %669
    %v671 = vsel %vm147, %v670, 0
    %673 = vmatprep.subr.mxu0 0.0
    %674 = vmatpush1.msra.mxu0 %v245
    %675 = vmatprep.subr.mxu0 0.0
    %676 = vmatpush1.msra.mxu0 %v246
    %677 = vmatprep.subr.mxu0 0.0
    %678 = vmatpush1.msra.mxu0 %v247
    %679 = vmatprep.subr.mxu0 0.0
    %680 = vmatpush1.msra.mxu0 %v248
    %681 = vmatprep.subr.mxu0 0.0
    %682 = vmatpush1.msra.mxu0 0.0
    %683 = vmatprep.subr.mxu0 0.0
    %684 = vmatpush1.msra.mxu0 0.0
    %685 = vmatprep.subr.mxu0 0.0
    %686 = vmatpush1.msra.mxu0 0.0
    %687 = vmatprep.subr.mxu0 0.0
    %688 = vmatpush1.msra.mxu0 0.0
    %689 = vmatprep.subr.mxu0 0.0
    %690 = vmatpush1.msra.mxu0 0.0
    %691 = vmatprep.subr.mxu0 0.0
    %692 = vmatpush1.msra.mxu0 0.0
    %693 = vmatprep.subr.mxu0 0.0
    %694 = vmatpush1.msra.mxu0 0.0
    %695 = vmatprep.subr.mxu0 0.0
    %696 = vmatpush1.msra.mxu0 0.0
    %697 = vmatprep.subr.mxu0 0.0
    %698 = vmatpush1.msra.mxu0 0.0
    %699 = vmatprep.subr.mxu0 0.0
    %700 = vmatpush1.msra.mxu0 0.0
    %701 = vmatprep.subr.mxu0 0.0
    %702 = vmatpush1.msra.mxu0 0.0
    %703 = vmatprep.subr.mxu0 0.0
    %704 = vmatpush1.msra.mxu0 0.0
    %705 = vmatprep.subr.mxu0 0.0
    %706 = vmatpush1.msra.mxu0 0.0
    %707 = vmatprep.subr.mxu0 0.0
    %708 = vmatpush1.msra.mxu0 0.0
    %709 = vmatprep.subr.mxu0 0.0
    %710 = vmatpush1.msra.mxu0 0.0
    %711 = vmatprep.subr.mxu0 0.0
    %712 = vmatpush1.msra.mxu0 0.0
    %713 = vmatprep.subr.mxu0 0.0
    %714 = vmatpush1.msra.mxu0 0.0
    %715 = vmatprep.subr.mxu0 0.0
    %716 = vmatpush1.msra.mxu0 0.0
    %717 = vmatprep.subr.mxu0 0.0
    %718 = vmatpush1.msra.mxu0 0.0
    %719 = vmatprep.subr.mxu0 0.0
    %720 = vmatpush1.msra.mxu0 0.0
    %721 = vmatprep.subr.mxu0 0.0
    %722 = vmatpush1.msra.mxu0 0.0
    %723 = vmatprep.subr.mxu0 0.0
    %724 = vmatpush1.msra.mxu0 0.0
    %725 = vmatprep.subr.mxu0 0.0
    %726 = vmatpush1.msra.mxu0 0.0
    %727 = vmatprep.subr.mxu0 0.0
    %728 = vmatpush1.msra.mxu0 0.0
    %729 = vmatprep.subr.mxu0 0.0
    %730 = vmatpush1.msra.mxu0 0.0
    %731 = vmatprep.subr.mxu0 0.0
    %732 = vmatpush1.msra.mxu0 0.0
    %733 = vmatprep.subr.mxu0 0.0
    %734 = vmatpush1.msra.mxu0 0.0
    %735 = vmatprep.subr.mxu0 0.0
    %736 = vmatpush1.msra.mxu0 0.0
    %737 = vmatprep.mubr.f32.mxu0 0.0
    %738 = vmatmul.mubr.f32.gmra.mrb[0].mxu0 %v671
    %v739 = vpop.f32.mrb[0].mxu0
    %v740 = vadd.f32 0.0, %v739
    %v741 = vpop.f32.mrb[0].mxu0
    %742 = vdwg.mxu0
    %v744 = vrot.slane %v740, 2
    %v746 = vadd.f32 %v237, %v744
    %v747 = vxor.u32 %v746, 2147483648
    %v748 = vmul.f32 %v747, 1.442695
    %v749 = vpow.pop %v748
    %v750 = vadd.f32 %v749, 1.0
    %v751 = vrcp.pop %v750
    %v752 = vmul.f32 1.0, %v751
    %v753 = vtanh.pop %v746
    %v755 = vrot.slane %v661, 2
    %v757 = vmul.f32 %v752, %v755
    %759 = vrot.lane.b32.xlu0 %v753, 32
    %v760 = vpop.permute.xlu0 %759
    %v762 = vmul.f32 %v752, %v760
    %764 = vrot.lane.b32.xlu0 %v762, 32
    %v765 = vpop.permute.xlu0 %764
    %v767 = vadd.f32 %v757, %v765
    %v768 = vtanh.pop %v767
    %770 = vrot.lane.b32.xlu0 %v768, 32
    %v771 = vpop.permute.xlu0 %770
    %v773 = vmul.f32 %v752, %v771
    %v775 = vrot.slane %v773, 6
    %776 = vrot.lane.b32.xlu0 %v775, 64
    %v777 = vpop.permute.xlu0 %776
    %v778 = vsel %vm147, %v777, 0
    %780 = vmatprep.subr.mxu0 0.0
    %781 = vmatpush1.msra.mxu0 %v245
    %782 = vmatprep.subr.mxu0 0.0
    %783 = vmatpush1.msra.mxu0 %v246
    %784 = vmatprep.subr.mxu0 0.0
    %785 = vmatpush1.msra.mxu0 %v247
    %786 = vmatprep.subr.mxu0 0.0
    %787 = vmatpush1.msra.mxu0 %v248
    %788 = vmatprep.subr.mxu0 0.0
    %789 = vmatpush1.msra.mxu0 0.0
    %790 = vmatprep.subr.mxu0 0.0
    %791 = vmatpush1.msra.mxu0 0.0
    %792 = vmatprep.subr.mxu0 0.0
    %793 = vmatpush1.msra.mxu0 0.0
    %794 = vmatprep.subr.mxu0 0.0
    %795 = vmatpush1.msra.mxu0 0.0
    %796 = vmatprep.subr.mxu0 0.0
    %797 = vmatpush1.msra.mxu0 0.0
    %798 = vmatprep.subr.mxu0 0.0
    %799 = vmatpush1.msra.mxu0 0.0
    %800 = vmatprep.subr.mxu0 0.0
    %801 = vmatpush1.msra.mxu0 0.0
    %802 = vmatprep.subr.mxu0 0.0
    %803 = vmatpush1.msra.mxu0 0.0
    %804 = vmatprep.subr.mxu0 0.0
    %805 = vmatpush1.msra.mxu0 0.0
    %806 = vmatprep.subr.mxu0 0.0
    %807 = vmatpush1.msra.mxu0 0.0
    %808 = vmatprep.subr.mxu0 0.0
    %809 = vmatpush1.msra.mxu0 0.0
    %810 = vmatprep.subr.mxu0 0.0
    %811 = vmatpush1.msra.mxu0 0.0
    %812 = vmatprep.subr.mxu0 0.0
    %813 = vmatpush1.msra.mxu0 0.0
    %814 = vmatprep.subr.mxu0 0.0
    %815 = vmatpush1.msra.mxu0 0.0
    %816 = vmatprep.subr.mxu0 0.0
    %817 = vmatpush1.msra.mxu0 0.0
    %818 = vmatprep.subr.mxu0 0.0
    %819 = vmatpush1.msra.mxu0 0.0
    %820 = vmatprep.subr.mxu0 0.0
    %821 = vmatpush1.msra.mxu0 0.0
    %822 = vmatprep.subr.mxu0 0.0
    %823 = vmatpush1.msra.mxu0 0.0
    %824 = vmatprep.subr.mxu0 0.0
    %825 = vmatpush1.msra.mxu0 0.0
    %826 = vmatprep.subr.mxu0 0.0
    %827 = vmatpush1.msra.mxu0 0.0
    %828 = vmatprep.subr.mxu0 0.0
    %829 = vmatpush1.msra.mxu0 0.0
    %830 = vmatprep.subr.mxu0 0.0
    %831 = vmatpush1.msra.mxu0 0.0
    %832 = vmatprep.subr.mxu0 0.0
    %833 = vmatpush1.msra.mxu0 0.0
    %834 = vmatprep.subr.mxu0 0.0
    %835 = vmatpush1.msra.mxu0 0.0
    %836 = vmatprep.subr.mxu0 0.0
    %837 = vmatpush1.msra.mxu0 0.0
    %838 = vmatprep.subr.mxu0 0.0
    %839 = vmatpush1.msra.mxu0 0.0
    %840 = vmatprep.subr.mxu0 0.0
    %841 = vmatpush1.msra.mxu0 0.0
    %842 = vmatprep.subr.mxu0 0.0
    %843 = vmatpush1.msra.mxu0 0.0
    %844 = vmatprep.mubr.f32.mxu0 0.0
    %845 = vmatmul.mubr.f32.gmra.mrb[0].mxu0 %v778
    %v846 = vpop.f32.mrb[0].mxu0
    %v847 = vadd.f32 0.0, %v846
    %v848 = vpop.f32.mrb[0].mxu0
    %849 = vdwg.mxu0
    %v851 = vrot.slane %v847, 4
    %v853 = vadd.f32 %v237, %v851
    %v854 = vxor.u32 %v853, 2147483648
    %v855 = vmul.f32 %v854, 1.442695
    %v856 = vpow.pop %v855
    %v857 = vadd.f32 %v856, 1.0
    %v858 = vrcp.pop %v857
    %v859 = vmul.f32 1.0, %v858
    %v860 = vtanh.pop %v853
    %v862 = vrot.slane %v767, 2
    %v864 = vmul.f32 %v859, %v862
    %866 = vrot.lane.b32.xlu0 %v860, 32
    %v867 = vpop.permute.xlu0 %866
    %v869 = vmul.f32 %v859, %v867
    %871 = vrot.lane.b32.xlu0 %v869, 32
    %v872 = vpop.permute.xlu0 %871
    %v874 = vadd.f32 %v864, %v872
    %v875 = vtanh.pop %v874
    %877 = vrot.lane.b32.xlu0 %v875, 32
    %v878 = vpop.permute.xlu0 %877
    %v880 = vmul.f32 %v859, %v878
    %v882 = vrot.slane %v880, 4
    %883 = vrot.lane.b32.xlu0 %v882, 64
    %v884 = vpop.permute.xlu0 %883
    %v885 = vsel %vm147, %v884, 0
    %887 = vmatprep.subr.mxu0 0.0
    %888 = vmatpush1.msra.mxu0 %v245
    %889 = vmatprep.subr.mxu0 0.0
    %890 = vmatpush1.msra.mxu0 %v246
    %891 = vmatprep.subr.mxu0 0.0
    %892 = vmatpush1.msra.mxu0 %v247
    %893 = vmatprep.subr.mxu0 0.0
    %894 = vmatpush1.msra.mxu0 %v248
    %895 = vmatprep.subr.mxu0 0.0
    %896 = vmatpush1.msra.mxu0 0.0
    %897 = vmatprep.subr.mxu0 0.0
    %898 = vmatpush1.msra.mxu0 0.0
    %899 = vmatprep.subr.mxu0 0.0
    %900 = vmatpush1.msra.mxu0 0.0
    %901 = vmatprep.subr.mxu0 0.0
    %902 = vmatpush1.msra.mxu0 0.0
    %903 = vmatprep.subr.mxu0 0.0
    %904 = vmatpush1.msra.mxu0 0.0
    %905 = vmatprep.subr.mxu0 0.0
    %906 = vmatpush1.msra.mxu0 0.0
    %907 = vmatprep.subr.mxu0 0.0
    %908 = vmatpush1.msra.mxu0 0.0
    %909 = vmatprep.subr.mxu0 0.0
    %910 = vmatpush1.msra.mxu0 0.0
    %911 = vmatprep.subr.mxu0 0.0
    %912 = vmatpush1.msra.mxu0 0.0
    %913 = vmatprep.subr.mxu0 0.0
    %914 = vmatpush1.msra.mxu0 0.0
    %915 = vmatprep.subr.mxu0 0.0
    %916 = vmatpush1.msra.mxu0 0.0
    %917 = vmatprep.subr.mxu0 0.0
    %918 = vmatpush1.msra.mxu0 0.0
    %919 = vmatprep.subr.mxu0 0.0
    %920 = vmatpush1.msra.mxu0 0.0
    %921 = vmatprep.subr.mxu0 0.0
    %922 = vmatpush1.msra.mxu0 0.0
    %923 = vmatprep.subr.mxu0 0.0
    %924 = vmatpush1.msra.mxu0 0.0
    %925 = vmatprep.subr.mxu0 0.0
    %926 = vmatpush1.msra.mxu0 0.0
    %927 = vmatprep.subr.mxu0 0.0
    %928 = vmatpush1.msra.mxu0 0.0
    %929 = vmatprep.subr.mxu0 0.0
    %930 = vmatpush1.msra.mxu0 0.0
    %931 = vmatprep.subr.mxu0 0.0
    %932 = vmatpush1.msra.mxu0 0.0
    %933 = vmatprep.subr.mxu0 0.0
    %934 = vmatpush1.msra.mxu0 0.0
    %935 = vmatprep.subr.mxu0 0.0
    %936 = vmatpush1.msra.mxu0 0.0
    %937 = vmatprep.subr.mxu0 0.0
    %938 = vmatpush1.msra.mxu0 0.0
    %939 = vmatprep.subr.mxu0 0.0
    %940 = vmatpush1.msra.mxu0 0.0
    %941 = vmatprep.subr.mxu0 0.0
    %942 = vmatpush1.msra.mxu0 0.0
    %943 = vmatprep.subr.mxu0 0.0
    %944 = vmatpush1.msra.mxu0 0.0
    %945 = vmatprep.subr.mxu0 0.0
    %946 = vmatpush1.msra.mxu0 0.0
    %947 = vmatprep.subr.mxu0 0.0
    %948 = vmatpush1.msra.mxu0 0.0
    %949 = vmatprep.subr.mxu0 0.0
    %950 = vmatpush1.msra.mxu0 0.0
    %951 = vmatprep.mubr.f32.mxu0 0.0
    %952 = vmatmul.mubr.f32.gmra.mrb[0].mxu0 %v885
    %v953 = vpop.f32.mrb[0].mxu0
    %v954 = vadd.f32 0.0, %v953
    %v955 = vpop.f32.mrb[0].mxu0
    %956 = vdwg.mxu0
    %v958 = vrot.slane %v954, 6
    %v960 = vadd.f32 %v237, %v958
    %v961 = vxor.u32 %v960, 2147483648
    %v962 = vmul.f32 %v961, 1.442695
    %v963 = vpow.pop %v962
    %v964 = vadd.f32 %v963, 1.0
    %v965 = vrcp.pop %v964
    %v966 = vmul.f32 1.0, %v965
    %v967 = vtanh.pop %v960
    %v969 = vrot.slane %v874, 2
    %v971 = vmul.f32 %v966, %v969
    %973 = vrot.lane.b32.xlu0 %v967, 32
    %v974 = vpop.permute.xlu0 %973
    %v976 = vmul.f32 %v966, %v974
    %978 = vrot.lane.b32.xlu0 %v976, 32
    %v979 = vpop.permute.xlu0 %978
    %v981 = vadd.f32 %v971, %v979
    %v982 = vtanh.pop %v981
    %984 = vrot.lane.b32.xlu0 %v982, 32
    %v985 = vpop.permute.xlu0 %984
    %v987 = vmul.f32 %v966, %v985
    %v989 = vrot.slane %v987, 2
    %990 = vrot.lane.b32.xlu0 %v989, 64
    %v991 = vpop.permute.xlu0 %990
    %v992 = vsel %vm147, %v991, 0
    %994 = vmatprep.subr.mxu0 0.0
    %995 = vmatpush1.msra.mxu0 %v245
    %996 = vmatprep.subr.mxu0 0.0
    %997 = vmatpush1.msra.mxu0 %v246
    %998 = vmatprep.subr.mxu0 0.0
    %999 = vmatpush1.msra.mxu0 %v247
    %1000 = vmatprep.subr.mxu0 0.0
    %1001 = vmatpush1.msra.mxu0 %v248
    %1002 = vmatprep.subr.mxu0 0.0
    %1003 = vmatpush1.msra.mxu0 0.0
    %1004 = vmatprep.subr.mxu0 0.0
    %1005 = vmatpush1.msra.mxu0 0.0
    %1006 = vmatprep.subr.mxu0 0.0
    %1007 = vmatpush1.msra.mxu0 0.0
    %1008 = vmatprep.subr.mxu0 0.0
    %1009 = vmatpush1.msra.mxu0 0.0
    %1010 = vmatprep.subr.mxu0 0.0
    %1011 = vmatpush1.msra.mxu0 0.0
    %1012 = vmatprep.subr.mxu0 0.0
    %1013 = vmatpush1.msra.mxu0 0.0
    %1014 = vmatprep.subr.mxu0 0.0
    %1015 = vmatpush1.msra.mxu0 0.0
    %1016 = vmatprep.subr.mxu0 0.0
    %1017 = vmatpush1.msra.mxu0 0.0
    %1018 = vmatprep.subr.mxu0 0.0
    %1019 = vmatpush1.msra.mxu0 0.0
    %1020 = vmatprep.subr.mxu0 0.0
    %1021 = vmatpush1.msra.mxu0 0.0
    %1022 = vmatprep.subr.mxu0 0.0
    %1023 = vmatpush1.msra.mxu0 0.0
    %1024 = vmatprep.subr.mxu0 0.0
    %1025 = vmatpush1.msra.mxu0 0.0
    %1026 = vmatprep.subr.mxu0 0.0
    %1027 = vmatpush1.msra.mxu0 0.0
    %1028 = vmatprep.subr.mxu0 0.0
    %1029 = vmatpush1.msra.mxu0 0.0
    %1030 = vmatprep.subr.mxu0 0.0
    %1031 = vmatpush1.msra.mxu0 0.0
    %1032 = vmatprep.subr.mxu0 0.0
    %1033 = vmatpush1.msra.mxu0 0.0
    %1034 = vmatprep.subr.mxu0 0.0
    %1035 = vmatpush1.msra.mxu0 0.0
    %1036 = vmatprep.subr.mxu0 0.0
    %1037 = vmatpush1.msra.mxu0 0.0
    %1038 = vmatprep.subr.mxu0 0.0
    %1039 = vmatpush1.msra.mxu0 0.0
    %1040 = vmatprep.subr.mxu0 0.0
    %1041 = vmatpush1.msra.mxu0 0.0
    %1042 = vmatprep.subr.mxu0 0.0
    %1043 = vmatpush1.msra.mxu0 0.0
    %1044 = vmatprep.subr.mxu0 0.0
    %1045 = vmatpush1.msra.mxu0 0.0
    %1046 = vmatprep.subr.mxu0 0.0
    %1047 = vmatpush1.msra.mxu0 0.0
    %1048 = vmatprep.subr.mxu0 0.0
    %1049 = vmatpush1.msra.mxu0 0.0
    %1050 = vmatprep.subr.mxu0 0.0
    %1051 = vmatpush1.msra.mxu0 0.0
    %1052 = vmatprep.subr.mxu0 0.0
    %1053 = vmatpush1.msra.mxu0 0.0
    %1054 = vmatprep.subr.mxu0 0.0
    %1055 = vmatpush1.msra.mxu0 0.0
    %1056 = vmatprep.subr.mxu0 0.0
    %1057 = vmatpush1.msra.mxu0 0.0
    %1058 = vmatprep.mubr.f32.mxu0 0.0
    %1059 = vmatmul.mubr.f32.gmra.mrb[0].mxu0 %v992
    %v1060 = vpop.f32.mrb[0].mxu0
    %v1061 = vadd.f32 0.0, %v1060
    %v1062 = vpop.f32.mrb[0].mxu0
    %1063 = vdwg.mxu0
    %v1064 = vadd.f32 %v237, %v1061
    %v1065 = vxor.u32 %v1064, 2147483648
    %v1066 = vmul.f32 %v1065, 1.442695
    %v1067 = vpow.pop %v1066
    %v1068 = vadd.f32 %v1067, 1.0
    %v1069 = vrcp.pop %v1068
    %v1070 = vmul.f32 1.0, %v1069
    %v1071 = vtanh.pop %v1064
    %v1073 = vrot.slane %v981, 2
    %v1075 = vmul.f32 %v1070, %v1073
    %1077 = vrot.lane.b32.xlu0 %v1071, 32
    %v1078 = vpop.permute.xlu0 %1077
    %v1080 = vmul.f32 %v1070, %v1078
    %1082 = vrot.lane.b32.xlu0 %v1080, 32
    %v1083 = vpop.permute.xlu0 %1082
    %v1085 = vadd.f32 %v1075, %v1083
    %v1086 = vtanh.pop %v1085
    %1088 = vrot.lane.b32.xlu0 %v1086, 32
    %v1089 = vpop.permute.xlu0 %1088
    %v1091 = vmul.f32 %v1070, %v1089
    %v1092 = vld [vmem:[#allocation8] sm:$0xff]
    %v1093 = vld [vmem:[#allocation8 + $0x8] sm:$0xff]
    %v1094 = vld [vmem:[#allocation8 + $0x10] sm:$0xff]
    %v1095 = vld [vmem:[#allocation8 + $0x18] sm:$0xff]
    %v1096 = vld [vmem:[%s5] sm:$0x1]
    %v1098 = vlaneseq
    %v1099 = vshrl.u32 %v1098, 7
    %v1100 = vsub.s32 0, %v1099
    %v1101 = vrot.slane %v1096, %v1100
    %1104 = vrot.lane.b32.xlu0 %v1091, 64
    %v1105 = vpop.permute.xlu0 %1104
    %v1106 = vsel %vm147, %v1105, 0
    %1108 = vmatprep.subr.mxu0 0.0
    %1109 = vmatpush1.msra.mxu0 %v1092
    %1110 = vmatprep.subr.mxu0 0.0
    %1111 = vmatpush1.msra.mxu0 %v1093
    %1112 = vmatprep.subr.mxu0 0.0
    %1113 = vmatpush1.msra.mxu0 %v1094
    %1114 = vmatprep.subr.mxu0 0.0
    %1115 = vmatpush1.msra.mxu0 %v1095
    %1116 = vmatprep.subr.mxu0 0.0
    %1117 = vmatpush1.msra.mxu0 0.0
    %1118 = vmatprep.subr.mxu0 0.0
    %1119 = vmatpush1.msra.mxu0 0.0
    %1120 = vmatprep.subr.mxu0 0.0
    %1121 = vmatpush1.msra.mxu0 0.0
    %1122 = vmatprep.subr.mxu0 0.0
    %1123 = vmatpush1.msra.mxu0 0.0
    %1124 = vmatprep.subr.mxu0 0.0
    %1125 = vmatpush1.msra.mxu0 0.0
    %1126 = vmatprep.subr.mxu0 0.0
    %1127 = vmatpush1.msra.mxu0 0.0
    %1128 = vmatprep.subr.mxu0 0.0
    %1129 = vmatpush1.msra.mxu0 0.0
    %1130 = vmatprep.subr.mxu0 0.0
    %1131 = vmatpush1.msra.mxu0 0.0
    %1132 = vmatprep.subr.mxu0 0.0
    %1133 = vmatpush1.msra.mxu0 0.0
    %1134 = vmatprep.subr.mxu0 0.0
    %1135 = vmatpush1.msra.mxu0 0.0
    %1136 = vmatprep.subr.mxu0 0.0
    %1137 = vmatpush1.msra.mxu0 0.0
    %1138 = vmatprep.subr.mxu0 0.0
    %1139 = vmatpush1.msra.mxu0 0.0
    %1140 = vmatprep.subr.mxu0 0.0
    %1141 = vmatpush1.msra.mxu0 0.0
    %1142 = vmatprep.subr.mxu0 0.0
    %1143 = vmatpush1.msra.mxu0 0.0
    %1144 = vmatprep.subr.mxu0 0.0
    %1145 = vmatpush1.msra.mxu0 0.0
    %1146 = vmatprep.subr.mxu0 0.0
    %1147 = vmatpush1.msra.mxu0 0.0
    %1148 = vmatprep.subr.mxu0 0.0
    %1149 = vmatpush1.msra.mxu0 0.0
    %1150 = vmatprep.subr.mxu0 0.0
    %1151 = vmatpush1.msra.mxu0 0.0
    %1152 = vmatprep.subr.mxu0 0.0
    %1153 = vmatpush1.msra.mxu0 0.0
    %1154 = vmatprep.subr.mxu0 0.0
    %1155 = vmatpush1.msra.mxu0 0.0
    %1156 = vmatprep.subr.mxu0 0.0
    %1157 = vmatpush1.msra.mxu0 0.0
    %1158 = vmatprep.subr.mxu0 0.0
    %1159 = vmatpush1.msra.mxu0 0.0
    %1160 = vmatprep.subr.mxu0 0.0
    %1161 = vmatpush1.msra.mxu0 0.0
    %1162 = vmatprep.subr.mxu0 0.0
    %1163 = vmatpush1.msra.mxu0 0.0
    %1164 = vmatprep.subr.mxu0 0.0
    %1165 = vmatpush1.msra.mxu0 0.0
    %1166 = vmatprep.subr.mxu0 0.0
    %1167 = vmatpush1.msra.mxu0 0.0
    %1168 = vmatprep.subr.mxu0 0.0
    %1169 = vmatpush1.msra.mxu0 0.0
    %1170 = vmatprep.subr.mxu0 0.0
    %1171 = vmatpush1.msra.mxu0 0.0
    %1172 = vmatprep.mubr.f32.mxu0 0.0
    %1173 = vmatmul.mubr.f32.gmra.mrb[0].mxu0 %v1106
    %v1174 = vpop.f32.mrb[0].mxu0
    %v1175 = vadd.f32 %v1101, %v1174
    %v1176 = vpop.f32.mrb[0].mxu0
    %1177 = vdwg.mxu0
    %v1178 = vmax.f32 %v1175, 0.0
    %v1179 = vld [vmem:[#allocation10] sm:$0xff]
    %v1180 = vld [vmem:[#allocation10 + $0x8] sm:$0xff]
    %v1181 = vld [vmem:[#allocation10 + $0x10] sm:$0xff]
    %v1182 = vld [vmem:[#allocation10 + $0x18] sm:$0xff]
    %v1183 = vld [vmem:[%s7] sm:$0x1]
    %v1185 = vlaneseq
    %v1186 = vshrl.u32 %v1185, 7
    %v1187 = vsub.s32 0, %v1186
    %v1188 = vrot.slane %v1183, %v1187
    %v1191 = vsel %vm147, %v1178, 0
    %1193 = vmatprep.subr.mxu0 0.0
    %1194 = vmatpush1.msra.mxu0 %v1179
    %1195 = vmatprep.subr.mxu0 0.0
    %1196 = vmatpush1.msra.mxu0 %v1180
    %1197 = vmatprep.subr.mxu0 0.0
    %1198 = vmatpush1.msra.mxu0 %v1181
    %1199 = vmatprep.subr.mxu0 0.0
    %1200 = vmatpush1.msra.mxu0 %v1182
    %1201 = vmatprep.subr.mxu0 0.0
    %1202 = vmatpush1.msra.mxu0 0.0
    %1203 = vmatprep.subr.mxu0 0.0
    %1204 = vmatpush1.msra.mxu0 0.0
    %1205 = vmatprep.subr.mxu0 0.0
    %1206 = vmatpush1.msra.mxu0 0.0
    %1207 = vmatprep.subr.mxu0 0.0
    %1208 = vmatpush1.msra.mxu0 0.0
    %1209 = vmatprep.subr.mxu0 0.0
    %1210 = vmatpush1.msra.mxu0 0.0
    %1211 = vmatprep.subr.mxu0 0.0
    %1212 = vmatpush1.msra.mxu0 0.0
    %1213 = vmatprep.subr.mxu0 0.0
    %1214 = vmatpush1.msra.mxu0 0.0
    %1215 = vmatprep.subr.mxu0 0.0
    %1216 = vmatpush1.msra.mxu0 0.0
    %1217 = vmatprep.subr.mxu0 0.0
    %1218 = vmatpush1.msra.mxu0 0.0
    %1219 = vmatprep.subr.mxu0 0.0
    %1220 = vmatpush1.msra.mxu0 0.0
    %1221 = vmatprep.subr.mxu0 0.0
    %1222 = vmatpush1.msra.mxu0 0.0
    %1223 = vmatprep.subr.mxu0 0.0
    %1224 = vmatpush1.msra.mxu0 0.0
    %1225 = vmatprep.subr.mxu0 0.0
    %1226 = vmatpush1.msra.mxu0 0.0
    %1227 = vmatprep.subr.mxu0 0.0
    %1228 = vmatpush1.msra.mxu0 0.0
    %1229 = vmatprep.subr.mxu0 0.0
    %1230 = vmatpush1.msra.mxu0 0.0
    %1231 = vmatprep.subr.mxu0 0.0
    %1232 = vmatpush1.msra.mxu0 0.0
    %1233 = vmatprep.subr.mxu0 0.0
    %1234 = vmatpush1.msra.mxu0 0.0
    %1235 = vmatprep.subr.mxu0 0.0
    %1236 = vmatpush1.msra.mxu0 0.0
    %1237 = vmatprep.subr.mxu0 0.0
    %1238 = vmatpush1.msra.mxu0 0.0
    %1239 = vmatprep.subr.mxu0 0.0
    %1240 = vmatpush1.msra.mxu0 0.0
    %1241 = vmatprep.subr.mxu0 0.0
    %1242 = vmatpush1.msra.mxu0 0.0
    %1243 = vmatprep.subr.mxu0 0.0
    %1244 = vmatpush1.msra.mxu0 0.0
    %1245 = vmatprep.subr.mxu0 0.0
    %1246 = vmatpush1.msra.mxu0 0.0
    %1247 = vmatprep.subr.mxu0 0.0
    %1248 = vmatpush1.msra.mxu0 0.0
    %1249 = vmatprep.subr.mxu0 0.0
    %1250 = vmatpush1.msra.mxu0 0.0
    %1251 = vmatprep.subr.mxu0 0.0
    %1252 = vmatpush1.msra.mxu0 0.0
    %1253 = vmatprep.subr.mxu0 0.0
    %1254 = vmatpush1.msra.mxu0 0.0
    %1255 = vmatprep.subr.mxu0 0.0
    %1256 = vmatpush1.msra.mxu0 0.0
    %1257 = vmatprep.mubr.f32.mxu0 0.0
    %1258 = vmatmul.mubr.f32.gmra.mrb[0].mxu0 %v1191
    %v1259 = vpop.f32.mrb[0].mxu0
    %v1260 = vadd.f32 %v1188, %v1259
    %v1261 = vpop.f32.mrb[0].mxu0
    %1262 = vdwg.mxu0
    %v1264 = vadd.f32 %v1260, %v1105
    %v1265 = vld [vmem:[%s8] sm:$0x1]
    %v1267 = vlaneseq
    %v1268 = vshrl.u32 %v1267, 7
    %v1269 = vsub.s32 0, %v1268
    %v1270 = vrot.slane %v1265, %v1269
    %v1272 = vmul.f32 %v1264, %v1270
    %vm1273 = vcmask 254976
    %v1274 = vsel %vm1273, %v1272, 0.0
    %1275 = vadd.xlane.f32.xlu0 %v1274
    %v1276 = vpop.xlane.xlu0 %1275
    %v1277 = vld [vmem:[#allocation2] sm:$0x1]
    %v1279 = vlaneseq
    %v1280 = vshrl.u32 %v1279, 7
    %v1281 = vsub.s32 0, %v1280
    %v1282 = vrot.slane %v1277, %v1281
    %v1284 = vadd.f32 %v1276, %v1282
    %v1285 = vxor.u32 %v1284, 2147483648
    %v1286 = vmul.f32 %v1285, 1.442695
    %v1287 = vpow.pop %v1286
    %v1288 = vadd.f32 %v1287, 1.0
    %v1289 = vrcp.pop %v1288
    %v1290 = vmul.f32 1.0, %v1289
    %vm1291 = vcmask 1024
    %1292 = vst.msk [vmem:[%s10] sm:$0x3] %vm1291, %v1290
    // Predicated region
    $region62: #{tpu_custom_call.1} parent=1 // pred_check
      _
    $region63: #{tpu_custom_call.1} parent=1 // pred_check_branch
      %1294 = sbr.rel (0) target = $region65
    $region64: #{tpu_custom_call.1} parent=1 // pred_region
      _
    $region65: #{tpu_custom_call.1} parent=1 // pred_fallthru
      _
    // Predicated region
    $region66: #{tpu_custom_call.1} parent=1 // pred_check
      _
    $region67: #{tpu_custom_call.1} parent=1 // pred_check_branch
      %1296 = sbr.rel (0) target = $region69
    $region68: #{tpu_custom_call.1} parent=1 // pred_region
      _
    $region69: #{tpu_custom_call.1} parent=1 // pred_fallthru
      _
    %1297 = vsyncpa [#allocation4], 1
    %1298 = vsyncpa [#allocation6], 1
    %1299 = vsyncpa [#allocation9], 1

</llo_original>
